<compile_context>
chip_gen: v6e
topology: v6e:2x2x1
jax: 0.10.0
libtpu: 0.0.40
codegen_flags: <defaults>
</compile_context>

<pallas_src>
import functools

import numpy as np

import jax
import jax.numpy as jnp
from jax.experimental import pallas as pl
from jax.experimental.pallas import tpu as pltpu


def _mish(x):
    # x * tanh(softplus(x))
    return x * jnp.tanh(jax.nn.softplus(x))


def _block_kernel(xcol_ref, x_ref, temb_ref,
                  w0_ref, b0_ref, g0_ref, be0_ref,
                  w1_ref, b1_ref, g1_ref, be1_ref,
                  wr_ref, br_ref,
                  gmat_ref, smat_ref, bmat_ref, mask_ref,
                  out_ref,
                  ypad_ref, ycol_ref,
                  *, kernel_size, n_groups, horizon):
    K = kernel_size
    p = K // 2
    Cout = out_ref.shape[0]
    L = out_ref.shape[1]                      # Bt * H lanes in this tile
    H = horizon
    Cg = Cout // n_groups
    inv_n = 1.0 / float(Cg * H)

    gmat = gmat_ref[...]                      # [Cout, Cout]  group membership
    smat = smat_ref[...]                      # [L, Bt]       per-batch lane-sum matrix
    bmat = bmat_ref[...]                      # [Bt, L]       lane broadcast matrix

    def group_norm(v, gamma, beta):
        # v: [Cout, L]; per-(batch, group) statistics via small MXU matmuls.
        s1 = jnp.dot(v, smat, preferred_element_type=jnp.float32)            # [Cout, Bt]
        mean = jnp.dot(gmat, s1, preferred_element_type=jnp.float32) * inv_n  # [Cout, Bt]
        d = v - jnp.dot(mean, bmat, preferred_element_type=jnp.float32)       # centered
        s2 = jnp.dot(d * d, smat, preferred_element_type=jnp.float32)
        var = jnp.dot(gmat, s2, preferred_element_type=jnp.float32) * inv_n
        rstd = jax.lax.rsqrt(var + 1e-5)                                      # [Cout, Bt]
        return d * jnp.dot(rstd, bmat, preferred_element_type=jnp.float32) * gamma + beta

    # --- Conv1dBlock 0: single im2col matmul (x_col built in the wrapper) -> GN -> Mish
    acc0 = jnp.dot(w0_ref[...], xcol_ref[...],
                   preferred_element_type=jnp.float32) + b0_ref[...]          # [Cout, L]
    y0 = _mish(group_norm(acc0, g0_ref[...], be0_ref[...]))

    # --- add precomputed time embedding (already broadcast over horizon in the wrapper)
    y0 = y0 + temb_ref[...]

    # --- Conv1dBlock 1: build im2col of y0 in VMEM (shifted + per-batch masked copies),
    #     then one [Cout, K*Cout] x [K*Cout, L] matmul.
    ypad_ref[:, 0:p] = jnp.zeros((Cout, p), jnp.float32)                      # tiny pad strips
    ypad_ref[:, p + L:2 * p + L] = jnp.zeros((Cout, p), jnp.float32)
    ypad_ref[:, p:p + L] = y0
    ypad = ypad_ref[...]                                                      # [Cout, L + 2p]
    for dk in range(K):
        z = ypad[:, dk:dk + L]                                                # uniform lane shift
        if dk != p:
            z = z * mask_ref[dk]                                              # zero cross-batch leaks
        ycol_ref[dk * Cout:(dk + 1) * Cout, :] = z
    acc1 = jnp.dot(w1_ref[...], ycol_ref[...],
                   preferred_element_type=jnp.float32) + b1_ref[...]          # [Cout, L]
    z1 = _mish(group_norm(acc1, g1_ref[...], be1_ref[...]))

    # --- residual path: 1x1 conv (identity case handled by identity weight / zero bias)
    res = jnp.dot(wr_ref[...], x_ref[...],
                  preferred_element_type=jnp.float32) + br_ref[...]

    out_ref[...] = (z1 + res).astype(out_ref.dtype)


def _pick_batch_tile(B, H, max_lanes=2048):
    """Fold as many batches as reasonable onto the lane axis.

    When tiling (Bt < B) the lane width of a block must be a multiple of 128;
    a full-array block is always legal, so fall back to Bt = B otherwise.
    """
    if B * H <= max_lanes:
        return B
    best = B
    for d in range(1, B):
        if B % d == 0 and (d * H) % 128 == 0 and d * H <= max_lanes:
            best = d
    return best


def residual_temporal_map_block_concat(x, t, params, *, kernel_size=5, n_groups=8):
    """x: [B, C_in, H]  t: [B, E]  ->  [B, C_out, H]"""
    f32 = jnp.float32
    B, Cin, H = x.shape
    Cout = params["w0"].shape[0]
    K = kernel_size
    p = K // 2

    Bt = _pick_batch_tile(B, H)
    nt = B // Bt
    L = Bt * H

    x = x.astype(f32)

    # ---- wrapper-side glue (layout plumbing + tiny precomputations) ----
    # im2col of x: x_col[dk*Cin + i, b*H + h] = xpad[b, i, h + dk]
    xpad = jnp.pad(x, ((0, 0), (0, 0), (p, p)))
    x_col = jnp.concatenate([xpad[:, :, dk:dk + H] for dk in range(K)], axis=1)   # [B, K*Cin, H]
    x_col = x_col.transpose(1, 0, 2).reshape(K * Cin, B * H)
    x2d = x.transpose(1, 0, 2).reshape(Cin, B * H)

    # time embedding: Mish -> Linear, computed once, broadcast over horizon (lane-dense)
    temb = _mish(t.astype(f32)) @ params["wt"].T.astype(f32) + params["bt"].astype(f32)  # [B, Cout]
    temb2d = jnp.broadcast_to(temb.T[:, :, None], (Cout, B, H)).reshape(Cout, B * H)

    # flattened conv weights for im2col matmuls
    w0f = params["w0"].transpose(0, 2, 1).reshape(Cout, K * Cin).astype(f32)       # [Cout, K*Cin]
    w1f = params["w1"].transpose(0, 2, 1).reshape(Cout, K * Cout).astype(f32)      # [Cout, K*Cout]
    wr2 = params["wr"][:, :, 0].astype(f32)                                        # [Cout, Cin]
    col = lambda v: v.reshape(-1, 1).astype(f32)

    # compile-time constant helper matrices (hoisted out of the kernel)
    Cg = Cout // n_groups
    gid = np.arange(Cout) // Cg
    gmat = jnp.asarray((gid[:, None] == gid[None, :]).astype(np.float32))          # [Cout, Cout]
    lane_b = np.arange(L) // H
    smat_np = (lane_b[:, None] == np.arange(Bt)[None, :]).astype(np.float32)       # [L, Bt]
    smat = jnp.asarray(smat_np)
    bmat = jnp.asarray(smat_np.T.copy())                                           # [Bt, L]
    h_of_lane = np.arange(L) % H
    masks_np = np.stack(
        [((h_of_lane + dk - p >= 0) & (h_of_lane + dk - p < H)).astype(np.float32)
         for dk in range(K)])[:, None, :]                                          # [K, 1, L]
    masks = jnp.asarray(masks_np)

    def full_spec(a):
        nd = a.ndim
        return pl.BlockSpec(a.shape, lambda i, _nd=nd: (0,) * _nd)

    kern = functools.partial(_block_kernel, kernel_size=K, n_groups=n_groups, horizon=H)

    out2d = pl.pallas_call(
        kern,
        out_shape=jax.ShapeDtypeStruct((Cout, B * H), f32),
        grid_spec=pltpu.PrefetchScalarGridSpec(
            num_scalar_prefetch=0,
            grid=(nt,),
            in_specs=[
                pl.BlockSpec((K * Cin, L), lambda i: (0, i)),   # x im2col, one batch tile per step
                pl.BlockSpec((Cin, L), lambda i: (0, i)),       # x (residual path)
                pl.BlockSpec((Cout, L), lambda i: (0, i)),      # precomputed time embedding
                full_spec(w0f), full_spec(col(params["b0"])),
                full_spec(col(params["g0"])), full_spec(col(params["be0"])),
                full_spec(w1f), full_spec(col(params["b1"])),
                full_spec(col(params["g1"])), full_spec(col(params["be1"])),
                full_spec(wr2), full_spec(col(params["br"])),
                full_spec(gmat), full_spec(smat), full_spec(bmat), full_spec(masks),
            ],
            out_specs=pl.BlockSpec((Cout, L), lambda i: (0, i)),
            scratch_shapes=[
                pltpu.VMEM((Cout, L + 2 * p), f32),     # padded y (conv1 input staging)
                pltpu.VMEM((K * Cout, L), f32),         # im2col of y (single fat matmul)
            ],
        ),
        compiler_params=pltpu.CompilerParams(dimension_semantics=("parallel",)),
    )(
        x_col, x2d, temb2d,
        w0f, col(params["b0"]), col(params["g0"]), col(params["be0"]),
        w1f, col(params["b1"]), col(params["g1"]), col(params["be1"]),
        wr2, col(params["br"]),
        gmat, smat, bmat, masks,
    )

    # back to PyTorch layout [B, Cout, H]
    return out2d.reshape(Cout, B, H).transpose(1, 0, 2)


def ref_forward(x, t, params, *, kernel_size=5, n_groups=8, eps=1e-5):
    """Pure-JAX reference matching the PyTorch forward."""
    p = kernel_size // 2

    def mish(v):
        return v * jnp.tanh(jax.nn.softplus(v))

    def conv1d(v, w, b):
        H = v.shape[-1]
        K = w.shape[-1]
        vp = jnp.pad(v, ((0, 0), (0, 0), (p, p)))
        out = b[None, :, None]
        for dk in range(K):
            out = out + jnp.einsum("oi,bih->boh", w[:, :, dk], vp[:, :, dk:dk + H])
        return out

    def gnorm(v, gamma, beta):
        B, C, H = v.shape
        vr = v.reshape(B, n_groups, -1)
        m = vr.mean(-1, keepdims=True)
        va = ((vr - m) ** 2).mean(-1, keepdims=True)
        vn = ((vr - m) / jnp.sqrt(va + eps)).reshape(B, C, H)
        return vn * gamma[None, :, None] + beta[None, :, None]

    h0 = mish(gnorm(conv1d(x, params["w0"], params["b0"]), params["g0"], params["be0"]))
    temb = mish(t) @ params["wt"].T + params["bt"]
    h0 = h0 + temb[:, :, None]
    h1 = mish(gnorm(conv1d(h0, params["w1"], params["b1"]), params["g1"], params["be1"]))
    res = jnp.einsum("oi,bih->boh", params["wr"][:, :, 0], x) + params["br"][None, :, None]
    return h1 + res


if __name__ == "__main__":
    B, Cin, Cout, E, H, K = 2, 4, 32, 16, 8, 5   # out_channels divisible by n_groups=8

    key = jax.random.PRNGKey(0)
    ks = jax.random.split(key, 14)
    x = jax.random.normal(ks[0], (B, Cin, H), jnp.float32)
    t = jax.random.normal(ks[1], (B, E), jnp.float32)

    params = {
        "w0": 0.2 * jax.random.normal(ks[2], (Cout, Cin, K), jnp.float32),
        "b0": 0.1 * jax.random.normal(ks[3], (Cout,), jnp.float32),
        "g0": 1.0 + 0.1 * jax.random.normal(ks[4], (Cout,), jnp.float32),
        "be0": 0.1 * jax.random.normal(ks[5], (Cout,), jnp.float32),
        "w1": 0.2 * jax.random.normal(ks[6], (Cout, Cout, K), jnp.float32),
        "b1": 0.1 * jax.random.normal(ks[7], (Cout,), jnp.float32),
        "g1": 1.0 + 0.1 * jax.random.normal(ks[8], (Cout,), jnp.float32),
        "be1": 0.1 * jax.random.normal(ks[9], (Cout,), jnp.float32),
        "wt": 0.2 * jax.random.normal(ks[10], (Cout, E), jnp.float32),
        "bt": 0.1 * jax.random.normal(ks[11], (Cout,), jnp.float32),
        "wr": 0.2 * jax.random.normal(ks[12], (Cout, Cin, 1), jnp.float32),
        "br": 0.1 * jax.random.normal(ks[13], (Cout,), jnp.float32),
    }

    out = jax.block_until_ready(residual_temporal_map_block_concat(x, t, params,
                                                                   kernel_size=K, n_groups=8))
    ref = ref_forward(x, t, params, kernel_size=K, n_groups=8)

    assert out.shape == (B, Cout, H), out.shape
    max_err = float(jnp.max(jnp.abs(out - ref)))
    assert jnp.allclose(out, ref, rtol=1e-3, atol=1e-3), f"max abs err {max_err}"
    print("KERNEL_OK")
</pallas_src>

<mosaic_0001>
module attributes {stable_mosaic.version = 11 : i64} {
  func.func @_block_kernel(%arg0: i32, %arg1: memref<20x16xf32, #tpu.memory_space<vmem>>, %arg2: memref<4x16xf32, #tpu.memory_space<vmem>>, %arg3: memref<32x16xf32, #tpu.memory_space<vmem>>, %arg4: memref<32x20xf32, #tpu.memory_space<vmem>>, %arg5: memref<32x1xf32, #tpu.memory_space<vmem>>, %arg6: memref<32x1xf32, #tpu.memory_space<vmem>>, %arg7: memref<32x1xf32, #tpu.memory_space<vmem>>, %arg8: memref<32x160xf32, #tpu.memory_space<vmem>>, %arg9: memref<32x1xf32, #tpu.memory_space<vmem>>, %arg10: memref<32x1xf32, #tpu.memory_space<vmem>>, %arg11: memref<32x1xf32, #tpu.memory_space<vmem>>, %arg12: memref<32x4xf32, #tpu.memory_space<vmem>>, %arg13: memref<32x1xf32, #tpu.memory_space<vmem>>, %arg14: memref<32x32xf32, #tpu.memory_space<vmem>>, %arg15: memref<16x2xf32, #tpu.memory_space<vmem>>, %arg16: memref<2x16xf32, #tpu.memory_space<vmem>>, %arg17: memref<5x1x16xf32, #tpu.memory_space<vmem>>, %arg18: memref<32x16xf32, #tpu.memory_space<vmem>>, %arg19: memref<32x20xf32, #tpu.memory_space<vmem>>, %arg20: memref<160x16xf32, #tpu.memory_space<vmem>>) attributes {dimension_semantics = [#tpu.dimension_semantics<parallel>], iteration_bounds = array<i64: 1>, scalar_prefetch = 0 : i64, scratch_operands = 2 : i64, tpu.core_type = #tpu.core_type<tc>, window_params = [{transform_indices = @transform_0, window_bounds = array<i64: 20, 16>}, {transform_indices = @transform_1, window_bounds = array<i64: 4, 16>}, {transform_indices = @transform_2, window_bounds = array<i64: 32, 16>}, {pipeline_mode = #tpu.pipeline_mode<synchronous>, transform_indices = @transform_3, window_bounds = array<i64: 32, 20>}, {pipeline_mode = #tpu.pipeline_mode<synchronous>, transform_indices = @transform_4, window_bounds = array<i64: 32, 1>}, {pipeline_mode = #tpu.pipeline_mode<synchronous>, transform_indices = @transform_5, window_bounds = array<i64: 32, 1>}, {pipeline_mode = #tpu.pipeline_mode<synchronous>, transform_indices = @transform_6, window_bounds = array<i64: 32, 1>}, {pipeline_mode = #tpu.pipeline_mode<synchronous>, transform_indices = @transform_7, window_bounds = array<i64: 32, 160>}, {pipeline_mode = #tpu.pipeline_mode<synchronous>, transform_indices = @transform_8, window_bounds = array<i64: 32, 1>}, {pipeline_mode = #tpu.pipeline_mode<synchronous>, transform_indices = @transform_9, window_bounds = array<i64: 32, 1>}, {pipeline_mode = #tpu.pipeline_mode<synchronous>, transform_indices = @transform_10, window_bounds = array<i64: 32, 1>}, {pipeline_mode = #tpu.pipeline_mode<synchronous>, transform_indices = @transform_11, window_bounds = array<i64: 32, 4>}, {pipeline_mode = #tpu.pipeline_mode<synchronous>, transform_indices = @transform_12, window_bounds = array<i64: 32, 1>}, {pipeline_mode = #tpu.pipeline_mode<synchronous>, transform_indices = @transform_13, window_bounds = array<i64: 32, 32>}, {pipeline_mode = #tpu.pipeline_mode<synchronous>, transform_indices = @transform_14, window_bounds = array<i64: 16, 2>}, {pipeline_mode = #tpu.pipeline_mode<synchronous>, transform_indices = @transform_15, window_bounds = array<i64: 2, 16>}, {pipeline_mode = #tpu.pipeline_mode<synchronous>, transform_indices = @transform_16, window_bounds = array<i64: 5, 1, 16>}, {transform_indices = @transform_17, window_bounds = array<i64: 32, 16>}]} {
    %c0 = arith.constant 0 : index
    %c0_0 = arith.constant 0 : index
    %0 = vector.load %arg14[%c0, %c0_0] : memref<32x32xf32, #tpu.memory_space<vmem>>, vector<32x32xf32>
    %c0_1 = arith.constant 0 : index
    %c0_2 = arith.constant 0 : index
    %1 = vector.load %arg15[%c0_1, %c0_2] : memref<16x2xf32, #tpu.memory_space<vmem>>, vector<16x2xf32>
    %c0_3 = arith.constant 0 : index
    %c0_4 = arith.constant 0 : index
    %2 = vector.load %arg16[%c0_3, %c0_4] : memref<2x16xf32, #tpu.memory_space<vmem>>, vector<2x16xf32>
    %c0_5 = arith.constant 0 : index
    %c0_6 = arith.constant 0 : index
    %3 = vector.load %arg4[%c0_5, %c0_6] : memref<32x20xf32, #tpu.memory_space<vmem>>, vector<32x20xf32>
    %c0_7 = arith.constant 0 : index
    %c0_8 = arith.constant 0 : index
    %4 = vector.load %arg1[%c0_7, %c0_8] : memref<20x16xf32, #tpu.memory_space<vmem>>, vector<20x16xf32>
    %cst = arith.constant dense<0.000000e+00> : vector<32x16xf32>
    %5 = tpu.matmul %3, %4, %cst {dimension_numbers = #tpu.dot_dimension_numbers<[1], [0], [0], [1], [0, 0, 1, 1], [], []>} : vector<32x20xf32>, vector<20x16xf32>, vector<32x16xf32> -> vector<32x16xf32>
    %c0_9 = arith.constant 0 : index
    %c0_10 = arith.constant 0 : index
    %6 = vector.load %arg5[%c0_9, %c0_10] : memref<32x1xf32, #tpu.memory_space<vmem>>, vector<32x1xf32>
    %7 = vector.broadcast %6 : vector<32x1xf32> to vector<32x16xf32>
    %8 = arith.addf %5, %7 : vector<32x16xf32>
    %c0_11 = arith.constant 0 : index
    %c0_12 = arith.constant 0 : index
    %9 = vector.load %arg6[%c0_11, %c0_12] : memref<32x1xf32, #tpu.memory_space<vmem>>, vector<32x1xf32>
    %c0_13 = arith.constant 0 : index
    %c0_14 = arith.constant 0 : index
    %10 = vector.load %arg7[%c0_13, %c0_14] : memref<32x1xf32, #tpu.memory_space<vmem>>, vector<32x1xf32>
    %cst_15 = arith.constant dense<0.000000e+00> : vector<32x2xf32>
    %11 = tpu.matmul %8, %1, %cst_15 {dimension_numbers = #tpu.dot_dimension_numbers<[1], [0], [0], [1], [0, 0, 1, 1], [], []>} : vector<32x16xf32>, vector<16x2xf32>, vector<32x2xf32> -> vector<32x2xf32>
    %cst_16 = arith.constant dense<0.000000e+00> : vector<32x2xf32>
    %12 = tpu.matmul %0, %11, %cst_16 {dimension_numbers = #tpu.dot_dimension_numbers<[1], [0], [0], [1], [0, 0, 1, 1], [], []>} : vector<32x32xf32>, vector<32x2xf32>, vector<32x2xf32> -> vector<32x2xf32>
    %cst_17 = arith.constant 3.125000e-02 : f32
    %13 = vector.broadcast %cst_17 : f32 to vector<32x2xf32>
    %14 = arith.mulf %12, %13 : vector<32x2xf32>
    %cst_18 = arith.constant dense<0.000000e+00> : vector<32x16xf32>
    %15 = tpu.matmul %14, %2, %cst_18 {dimension_numbers = #tpu.dot_dimension_numbers<[1], [0], [0], [1], [0, 0, 1, 1], [], []>} : vector<32x2xf32>, vector<2x16xf32>, vector<32x16xf32> -> vector<32x16xf32>
    %16 = arith.subf %8, %15 : vector<32x16xf32>
    %17 = arith.mulf %16, %16 : vector<32x16xf32>
    %cst_19 = arith.constant dense<0.000000e+00> : vector<32x2xf32>
    %18 = tpu.matmul %17, %1, %cst_19 {dimension_numbers = #tpu.dot_dimension_numbers<[1], [0], [0], [1], [0, 0, 1, 1], [], []>} : vector<32x16xf32>, vector<16x2xf32>, vector<32x2xf32> -> vector<32x2xf32>
    %cst_20 = arith.constant dense<0.000000e+00> : vector<32x2xf32>
    %19 = tpu.matmul %0, %18, %cst_20 {dimension_numbers = #tpu.dot_dimension_numbers<[1], [0], [0], [1], [0, 0, 1, 1], [], []>} : vector<32x32xf32>, vector<32x2xf32>, vector<32x2xf32> -> vector<32x2xf32>
    %cst_21 = arith.constant 3.125000e-02 : f32
    %20 = vector.broadcast %cst_21 : f32 to vector<32x2xf32>
    %21 = arith.mulf %19, %20 : vector<32x2xf32>
    %cst_22 = arith.constant 9.99999974E-6 : f32
    %22 = vector.broadcast %cst_22 : f32 to vector<32x2xf32>
    %23 = arith.addf %21, %22 : vector<32x2xf32>
    %24 = math.rsqrt %23 : vector<32x2xf32>
    %cst_23 = arith.constant dense<0.000000e+00> : vector<32x16xf32>
    %25 = tpu.matmul %24, %2, %cst_23 {dimension_numbers = #tpu.dot_dimension_numbers<[1], [0], [0], [1], [0, 0, 1, 1], [], []>} : vector<32x2xf32>, vector<2x16xf32>, vector<32x16xf32> -> vector<32x16xf32>
    %26 = arith.mulf %16, %25 : vector<32x16xf32>
    %27 = vector.broadcast %9 : vector<32x1xf32> to vector<32x16xf32>
    %28 = arith.mulf %26, %27 : vector<32x16xf32>
    %29 = vector.broadcast %10 : vector<32x1xf32> to vector<32x16xf32>
    %30 = arith.addf %28, %29 : vector<32x16xf32>
    %cst_24 = arith.constant 0.000000e+00 : f32
    %31 = vector.broadcast %cst_24 : f32 to vector<32x16xf32>
    %32 = arith.maximumf %30, %31 : vector<32x16xf32>
    %33 = vector.broadcast %cst_24 : f32 to vector<32x16xf32>
    %34 = arith.subf %30, %33 : vector<32x16xf32>
    %35 = arith.cmpf one, %34, %34 : vector<32x16xf32>
    %36 = vector.broadcast %cst_24 : f32 to vector<32x16xf32>
    %37 = arith.addf %30, %36 : vector<32x16xf32>
    %38 = math.absf %34 : vector<32x16xf32>
    %cst_25 = arith.constant 0.000000e+00 : f32
    %39 = vector.broadcast %cst_25 : f32 to vector<32x16xf32>
    %40 = arith.subf %39, %38 : vector<32x16xf32>
    %41 = math.exp %40 : vector<32x16xf32>
    %42 = math.log1p %41 : vector<32x16xf32>
    %43 = arith.addf %32, %42 : vector<32x16xf32>
    %44 = arith.select %35, %37, %43 : vector<32x16xi1>, vector<32x16xf32>
    %45 = math.tanh %44 : vector<32x16xf32>
    %46 = arith.mulf %30, %45 : vector<32x16xf32>
    %c0_26 = arith.constant 0 : index
    %c0_27 = arith.constant 0 : index
    %47 = vector.load %arg3[%c0_26, %c0_27] : memref<32x16xf32, #tpu.memory_space<vmem>>, vector<32x16xf32>
    %48 = arith.addf %46, %47 : vector<32x16xf32>
    %cst_28 = arith.constant 0.000000e+00 : f32
    %49 = vector.broadcast %cst_28 : f32 to vector<32x2xf32>
    %c0_29 = arith.constant 0 : index
    %c0_30 = arith.constant 0 : index
    %50 = vector.load %arg19[%c0_29, %c0_30] : memref<32x20xf32, #tpu.memory_space<vmem>>, vector<32x2xf32>
    tpu.vector_store %arg19[%c0_29, %c0_30], %49 {strides = array<i32>} : memref<32x20xf32, #tpu.memory_space<vmem>>, vector<32x2xf32>,
    %cst_31 = arith.constant 0.000000e+00 : f32
    %51 = vector.broadcast %cst_31 : f32 to vector<32x2xf32>
    %c0_32 = arith.constant 0 : index
    %c18 = arith.constant 18 : index
    %52 = vector.load %arg19[%c0_32, %c18] : memref<32x20xf32, #tpu.memory_space<vmem>>, vector<32x2xf32>
    tpu.vector_store %arg19[%c0_32, %c18], %51 {strides = array<i32>} : memref<32x20xf32, #tpu.memory_space<vmem>>, vector<32x2xf32>,
    %c0_33 = arith.constant 0 : index
    %c2 = arith.constant 2 : index
    %53 = vector.load %arg19[%c0_33, %c2] : memref<32x20xf32, #tpu.memory_space<vmem>>, vector<32x16xf32>
    tpu.vector_store %arg19[%c0_33, %c2], %48 {strides = array<i32>} : memref<32x20xf32, #tpu.memory_space<vmem>>, vector<32x16xf32>,
    %c0_34 = arith.constant 0 : index
    %c0_35 = arith.constant 0 : index
    %54 = vector.load %arg19[%c0_34, %c0_35] : memref<32x20xf32, #tpu.memory_space<vmem>>, vector<32x20xf32>
    %55 = vector.extract_strided_slice %54 {offsets = [0, 0], sizes = [32, 16], strides = [1, 1]} : vector<32x20xf32> to vector<32x16xf32>
    %c0_36 = arith.constant 0 : index
    %c0_37 = arith.constant 0 : index
    %c0_38 = arith.constant 0 : index
    %56 = vector.load %arg17[%c0_36, %c0_37, %c0_38] : memref<5x1x16xf32, #tpu.memory_space<vmem>>, vector<1x1x16xf32>
    %57 = vector.shape_cast %56 : vector<1x1x16xf32> to vector<1x16xf32>
    %58 = vector.broadcast %57 : vector<1x16xf32> to vector<32x16xf32>
    %59 = arith.mulf %55, %58 : vector<32x16xf32>
    %c0_39 = arith.constant 0 : index
    %c0_40 = arith.constant 0 : index
    %60 = vector.load %arg20[%c0_39, %c0_40] : memref<160x16xf32, #tpu.memory_space<vmem>>, vector<32x16xf32>
    tpu.vector_store %arg20[%c0_39, %c0_40], %59 {strides = array<i32>} : memref<160x16xf32, #tpu.memory_space<vmem>>, vector<32x16xf32>,
    %61 = vector.extract_strided_slice %54 {offsets = [0, 1], sizes = [32, 16], strides = [1, 1]} : vector<32x20xf32> to vector<32x16xf32>
    %c1 = arith.constant 1 : index
    %c0_41 = arith.constant 0 : index
    %c0_42 = arith.constant 0 : index
    %62 = vector.load %arg17[%c1, %c0_41, %c0_42] : memref<5x1x16xf32, #tpu.memory_space<vmem>>, vector<1x1x16xf32>
    %63 = vector.shape_cast %62 : vector<1x1x16xf32> to vector<1x16xf32>
    %64 = vector.broadcast %63 : vector<1x16xf32> to vector<32x16xf32>
    %65 = arith.mulf %61, %64 : vector<32x16xf32>
    %c32 = arith.constant 32 : index
    %c0_43 = arith.constant 0 : index
    %66 = vector.load %arg20[%c32, %c0_43] : memref<160x16xf32, #tpu.memory_space<vmem>>, vector<32x16xf32>
    tpu.vector_store %arg20[%c32, %c0_43], %65 {strides = array<i32>} : memref<160x16xf32, #tpu.memory_space<vmem>>, vector<32x16xf32>,
    %67 = vector.extract_strided_slice %54 {offsets = [0, 2], sizes = [32, 16], strides = [1, 1]} : vector<32x20xf32> to vector<32x16xf32>
    %c64 = arith.constant 64 : index
    %c0_44 = arith.constant 0 : index
    %68 = vector.load %arg20[%c64, %c0_44] : memref<160x16xf32, #tpu.memory_space<vmem>>, vector<32x16xf32>
    tpu.vector_store %arg20[%c64, %c0_44], %67 {strides = array<i32>} : memref<160x16xf32, #tpu.memory_space<vmem>>, vector<32x16xf32>,
    %69 = vector.extract_strided_slice %54 {offsets = [0, 3], sizes = [32, 16], strides = [1, 1]} : vector<32x20xf32> to vector<32x16xf32>
    %c3 = arith.constant 3 : index
    %c0_45 = arith.constant 0 : index
    %c0_46 = arith.constant 0 : index
    %70 = vector.load %arg17[%c3, %c0_45, %c0_46] : memref<5x1x16xf32, #tpu.memory_space<vmem>>, vector<1x1x16xf32>
    %71 = vector.shape_cast %70 : vector<1x1x16xf32> to vector<1x16xf32>
    %72 = vector.broadcast %71 : vector<1x16xf32> to vector<32x16xf32>
    %73 = arith.mulf %69, %72 : vector<32x16xf32>
    %c96 = arith.constant 96 : index
    %c0_47 = arith.constant 0 : index
    %74 = vector.load %arg20[%c96, %c0_47] : memref<160x16xf32, #tpu.memory_space<vmem>>, vector<32x16xf32>
    tpu.vector_store %arg20[%c96, %c0_47], %73 {strides = array<i32>} : memref<160x16xf32, #tpu.memory_space<vmem>>, vector<32x16xf32>,
    %75 = vector.extract_strided_slice %54 {offsets = [0, 4], sizes = [32, 16], strides = [1, 1]} : vector<32x20xf32> to vector<32x16xf32>
    %c4 = arith.constant 4 : index
    %c0_48 = arith.constant 0 : index
    %c0_49 = arith.constant 0 : index
    %76 = vector.load %arg17[%c4, %c0_48, %c0_49] : memref<5x1x16xf32, #tpu.memory_space<vmem>>, vector<1x1x16xf32>
    %77 = vector.shape_cast %76 : vector<1x1x16xf32> to vector<1x16xf32>
    %78 = vector.broadcast %77 : vector<1x16xf32> to vector<32x16xf32>
    %79 = arith.mulf %75, %78 : vector<32x16xf32>
    %c128 = arith.constant 128 : index
    %c0_50 = arith.constant 0 : index
    %80 = vector.load %arg20[%c128, %c0_50] : memref<160x16xf32, #tpu.memory_space<vmem>>, vector<32x16xf32>
    tpu.vector_store %arg20[%c128, %c0_50], %79 {strides = array<i32>} : memref<160x16xf32, #tpu.memory_space<vmem>>, vector<32x16xf32>,
    %c0_51 = arith.constant 0 : index
    %c0_52 = arith.constant 0 : index
    %81 = vector.load %arg8[%c0_51, %c0_52] : memref<32x160xf32, #tpu.memory_space<vmem>>, vector<32x160xf32>
    %c0_53 = arith.constant 0 : index
    %c0_54 = arith.constant 0 : index
    %82 = vector.load %arg20[%c0_53, %c0_54] : memref<160x16xf32, #tpu.memory_space<vmem>>, vector<160x16xf32>
    %cst_55 = arith.constant dense<0.000000e+00> : vector<32x16xf32>
    %83 = tpu.matmul %81, %82, %cst_55 {dimension_numbers = #tpu.dot_dimension_numbers<[1], [0], [0], [1], [0, 0, 1, 1], [], []>} : vector<32x160xf32>, vector<160x16xf32>, vector<32x16xf32> -> vector<32x16xf32>
    %c0_56 = arith.constant 0 : index
    %c0_57 = arith.constant 0 : index
    %84 = vector.load %arg9[%c0_56, %c0_57] : memref<32x1xf32, #tpu.memory_space<vmem>>, vector<32x1xf32>
    %85 = vector.broadcast %84 : vector<32x1xf32> to vector<32x16xf32>
    %86 = arith.addf %83, %85 : vector<32x16xf32>
    %c0_58 = arith.constant 0 : index
    %c0_59 = arith.constant 0 : index
    %87 = vector.load %arg10[%c0_58, %c0_59] : memref<32x1xf32, #tpu.memory_space<vmem>>, vector<32x1xf32>
    %c0_60 = arith.constant 0 : index
    %c0_61 = arith.constant 0 : index
    %88 = vector.load %arg11[%c0_60, %c0_61] : memref<32x1xf32, #tpu.memory_space<vmem>>, vector<32x1xf32>
    %cst_62 = arith.constant dense<0.000000e+00> : vector<32x2xf32>
    %89 = tpu.matmul %86, %1, %cst_62 {dimension_numbers = #tpu.dot_dimension_numbers<[1], [0], [0], [1], [0, 0, 1, 1], [], []>} : vector<32x16xf32>, vector<16x2xf32>, vector<32x2xf32> -> vector<32x2xf32>
    %cst_63 = arith.constant dense<0.000000e+00> : vector<32x2xf32>
    %90 = tpu.matmul %0, %89, %cst_63 {dimension_numbers = #tpu.dot_dimension_numbers<[1], [0], [0], [1], [0, 0, 1, 1], [], []>} : vector<32x32xf32>, vector<32x2xf32>, vector<32x2xf32> -> vector<32x2xf32>
    %cst_64 = arith.constant 3.125000e-02 : f32
    %91 = vector.broadcast %cst_64 : f32 to vector<32x2xf32>
    %92 = arith.mulf %90, %91 : vector<32x2xf32>
    %cst_65 = arith.constant dense<0.000000e+00> : vector<32x16xf32>
    %93 = tpu.matmul %92, %2, %cst_65 {dimension_numbers = #tpu.dot_dimension_numbers<[1], [0], [0], [1], [0, 0, 1, 1], [], []>} : vector<32x2xf32>, vector<2x16xf32>, vector<32x16xf32> -> vector<32x16xf32>
    %94 = arith.subf %86, %93 : vector<32x16xf32>
    %95 = arith.mulf %94, %94 : vector<32x16xf32>
    %cst_66 = arith.constant dense<0.000000e+00> : vector<32x2xf32>
    %96 = tpu.matmul %95, %1, %cst_66 {dimension_numbers = #tpu.dot_dimension_numbers<[1], [0], [0], [1], [0, 0, 1, 1], [], []>} : vector<32x16xf32>, vector<16x2xf32>, vector<32x2xf32> -> vector<32x2xf32>
    %cst_67 = arith.constant dense<0.000000e+00> : vector<32x2xf32>
    %97 = tpu.matmul %0, %96, %cst_67 {dimension_numbers = #tpu.dot_dimension_numbers<[1], [0], [0], [1], [0, 0, 1, 1], [], []>} : vector<32x32xf32>, vector<32x2xf32>, vector<32x2xf32> -> vector<32x2xf32>
    %cst_68 = arith.constant 3.125000e-02 : f32
    %98 = vector.broadcast %cst_68 : f32 to vector<32x2xf32>
    %99 = arith.mulf %97, %98 : vector<32x2xf32>
    %cst_69 = arith.constant 9.99999974E-6 : f32
    %100 = vector.broadcast %cst_69 : f32 to vector<32x2xf32>
    %101 = arith.addf %99, %100 : vector<32x2xf32>
    %102 = math.rsqrt %101 : vector<32x2xf32>
    %cst_70 = arith.constant dense<0.000000e+00> : vector<32x16xf32>
    %103 = tpu.matmul %102, %2, %cst_70 {dimension_numbers = #tpu.dot_dimension_numbers<[1], [0], [0], [1], [0, 0, 1, 1], [], []>} : vector<32x2xf32>, vector<2x16xf32>, vector<32x16xf32> -> vector<32x16xf32>
    %104 = arith.mulf %94, %103 : vector<32x16xf32>
    %105 = vector.broadcast %87 : vector<32x1xf32> to vector<32x16xf32>
    %106 = arith.mulf %104, %105 : vector<32x16xf32>
    %107 = vector.broadcast %88 : vector<32x1xf32> to vector<32x16xf32>
    %108 = arith.addf %106, %107 : vector<32x16xf32>
    %cst_71 = arith.constant 0.000000e+00 : f32
    %109 = vector.broadcast %cst_71 : f32 to vector<32x16xf32>
    %110 = arith.maximumf %108, %109 : vector<32x16xf32>
    %111 = vector.broadcast %cst_71 : f32 to vector<32x16xf32>
    %112 = arith.subf %108, %111 : vector<32x16xf32>
    %113 = arith.cmpf one, %112, %112 : vector<32x16xf32>
    %114 = vector.broadcast %cst_71 : f32 to vector<32x16xf32>
    %115 = arith.addf %108, %114 : vector<32x16xf32>
    %116 = math.absf %112 : vector<32x16xf32>
    %cst_72 = arith.constant 0.000000e+00 : f32
    %117 = vector.broadcast %cst_72 : f32 to vector<32x16xf32>
    %118 = arith.subf %117, %116 : vector<32x16xf32>
    %119 = math.exp %118 : vector<32x16xf32>
    %120 = math.log1p %119 : vector<32x16xf32>
    %121 = arith.addf %110, %120 : vector<32x16xf32>
    %122 = arith.select %113, %115, %121 : vector<32x16xi1>, vector<32x16xf32>
    %123 = math.tanh %122 : vector<32x16xf32>
    %124 = arith.mulf %108, %123 : vector<32x16xf32>
    %c0_73 = arith.constant 0 : index
    %c0_74 = arith.constant 0 : index
    %125 = vector.load %arg12[%c0_73, %c0_74] : memref<32x4xf32, #tpu.memory_space<vmem>>, vector<32x4xf32>
    %c0_75 = arith.constant 0 : index
    %c0_76 = arith.constant 0 : index
    %126 = vector.load %arg2[%c0_75, %c0_76] : memref<4x16xf32, #tpu.memory_space<vmem>>, vector<4x16xf32>
    %cst_77 = arith.constant dense<0.000000e+00> : vector<32x16xf32>
    %127 = tpu.matmul %125, %126, %cst_77 {dimension_numbers = #tpu.dot_dimension_numbers<[1], [0], [0], [1], [0, 0, 1, 1], [], []>} : vector<32x4xf32>, vector<4x16xf32>, vector<32x16xf32> -> vector<32x16xf32>
    %c0_78 = arith.constant 0 : index
    %c0_79 = arith.constant 0 : index
    %128 = vector.load %arg13[%c0_78, %c0_79] : memref<32x1xf32, #tpu.memory_space<vmem>>, vector<32x1xf32>
    %129 = vector.broadcast %128 : vector<32x1xf32> to vector<32x16xf32>
    %130 = arith.addf %127, %129 : vector<32x16xf32>
    %131 = arith.addf %124, %130 : vector<32x16xf32>
    %c0_80 = arith.constant 0 : index
    %c0_81 = arith.constant 0 : index
    %132 = vector.load %arg18[%c0_80, %c0_81] : memref<32x16xf32, #tpu.memory_space<vmem>>, vector<32x16xf32>
    tpu.vector_store %arg18[%c0_80, %c0_81], %131 {strides = array<i32>} : memref<32x16xf32, #tpu.memory_space<vmem>>, vector<32x16xf32>,
    return
  }
  func.func @transform_0(%arg0: i32) -> (i32, i32) {
    %c0_i32 = arith.constant 0 : i32
    %c0_i32_0 = arith.constant 0 : i32
    return %c0_i32, %arg0 : i32, i32
  }
  func.func @transform_1(%arg0: i32) -> (i32, i32) {
    %c0_i32 = arith.constant 0 : i32
    %c0_i32_0 = arith.constant 0 : i32
    return %c0_i32, %arg0 : i32, i32
  }
  func.func @transform_2(%arg0: i32) -> (i32, i32) {
    %c0_i32 = arith.constant 0 : i32
    %c0_i32_0 = arith.constant 0 : i32
    return %c0_i32, %arg0 : i32, i32
  }
  func.func @transform_3(%arg0: i32) -> (i32, i32) {
    %c0_i32 = arith.constant 0 : i32
    %c0_i32_0 = arith.constant 0 : i32
    %c0_i32_1 = arith.constant 0 : i32
    return %c0_i32, %c0_i32_0 : i32, i32
  }
  func.func @transform_4(%arg0: i32) -> (i32, i32) {
    %c0_i32 = arith.constant 0 : i32
    %c0_i32_0 = arith.constant 0 : i32
    %c0_i32_1 = arith.constant 0 : i32
    return %c0_i32, %c0_i32_0 : i32, i32
  }
  func.func @transform_5(%arg0: i32) -> (i32, i32) {
    %c0_i32 = arith.constant 0 : i32
    %c0_i32_0 = arith.constant 0 : i32
    %c0_i32_1 = arith.constant 0 : i32
    return %c0_i32, %c0_i32_0 : i32, i32
  }
  func.func @transform_6(%arg0: i32) -> (i32, i32) {
    %c0_i32 = arith.constant 0 : i32
    %c0_i32_0 = arith.constant 0 : i32
    %c0_i32_1 = arith.constant 0 : i32
    return %c0_i32, %c0_i32_0 : i32, i32
  }
  func.func @transform_7(%arg0: i32) -> (i32, i32) {
    %c0_i32 = arith.constant 0 : i32
    %c0_i32_0 = arith.constant 0 : i32
    %c0_i32_1 = arith.constant 0 : i32
    return %c0_i32, %c0_i32_0 : i32, i32
  }
  func.func @transform_8(%arg0: i32) -> (i32, i32) {
    %c0_i32 = arith.constant 0 : i32
    %c0_i32_0 = arith.constant 0 : i32
    %c0_i32_1 = arith.constant 0 : i32
    return %c0_i32, %c0_i32_0 : i32, i32
  }
  func.func @transform_9(%arg0: i32) -> (i32, i32) {
    %c0_i32 = arith.constant 0 : i32
    %c0_i32_0 = arith.constant 0 : i32
    %c0_i32_1 = arith.constant 0 : i32
    return %c0_i32, %c0_i32_0 : i32, i32
  }
  func.func @transform_10(%arg0: i32) -> (i32, i32) {
    %c0_i32 = arith.constant 0 : i32
    %c0_i32_0 = arith.constant 0 : i32
    %c0_i32_1 = arith.constant 0 : i32
    return %c0_i32, %c0_i32_0 : i32, i32
  }
  func.func @transform_11(%arg0: i32) -> (i32, i32) {
    %c0_i32 = arith.constant 0 : i32
    %c0_i32_0 = arith.constant 0 : i32
    %c0_i32_1 = arith.constant 0 : i32
    return %c0_i32, %c0_i32_0 : i32, i32
  }
  func.func @transform_12(%arg0: i32) -> (i32, i32) {
    %c0_i32 = arith.constant 0 : i32
    %c0_i32_0 = arith.constant 0 : i32
    %c0_i32_1 = arith.constant 0 : i32
    return %c0_i32, %c0_i32_0 : i32, i32
  }
  func.func @transform_13(%arg0: i32) -> (i32, i32) {
    %c0_i32 = arith.constant 0 : i32
    %c0_i32_0 = arith.constant 0 : i32
    %c0_i32_1 = arith.constant 0 : i32
    return %c0_i32, %c0_i32_0 : i32, i32
  }
  func.func @transform_14(%arg0: i32) -> (i32, i32) {
    %c0_i32 = arith.constant 0 : i32
    %c0_i32_0 = arith.constant 0 : i32
    %c0_i32_1 = arith.constant 0 : i32
    return %c0_i32, %c0_i32_0 : i32, i32
  }
  func.func @transform_15(%arg0: i32) -> (i32, i32) {
    %c0_i32 = arith.constant 0 : i32
    %c0_i32_0 = arith.constant 0 : i32
    %c0_i32_1 = arith.constant 0 : i32
    return %c0_i32, %c0_i32_0 : i32, i32
  }
  func.func @transform_16(%arg0: i32) -> (i32, i32, i32) {
    %c0_i32 = arith.constant 0 : i32
    %c0_i32_0 = arith.constant 0 : i32
    %c0_i32_1 = arith.constant 0 : i32
    %c0_i32_2 = arith.constant 0 : i32
    return %c0_i32, %c0_i32_0, %c0_i32_1 : i32, i32, i32
  }
  func.func @transform_17(%arg0: i32) -> (i32, i32) {
    %c0_i32 = arith.constant 0 : i32
    %c0_i32_0 = arith.constant 0 : i32
    return %c0_i32, %arg0 : i32, i32
  }
}

</mosaic_0001>

<llo_original>
// kernel: tpu_custom_call.1
$region0: #{tpu_custom_call.1}
  #allocation0 [shape = 'u32[]', space=smem, size = 0x4, offset = 0x4, fixed_abs, tag = 'smem constant byte address 0x4 - core index']
  #allocation1 [shape = 'u32[144,128]{1,0:T(1,128)}', space=vmem, size = 0x12000, scoped, tag = 'internal scratch']
  #allocation2 [shape = 'f32[32,20]{1,0:T(8,128)}', space=vmem, size = 0x4000, scoped, tag = 'scratch operand']
  #allocation3 [shape = 'f32[160,16]{1,0:T(8,128)}', space=vmem, size = 0x14000, scoped, tag = 'scratch operand']
  %s0 = inlined_call_operand.vmem [shape: f32[20,16], index: 0, kind: input, shape index: {}]
  %s1 = inlined_call_operand.vmem [shape: f32[4,16], index: 1, kind: input, shape index: {}]
  %s2 = inlined_call_operand.vmem [shape: f32[32,16], index: 2, kind: input, shape index: {}]
  %s3 = inlined_call_operand.vmem [shape: f32[32,20], index: 3, kind: input, shape index: {}]
  %s4 = inlined_call_operand.vmem [shape: f32[32,1], index: 4, kind: input, shape index: {}]
  %s5 = inlined_call_operand.vmem [shape: f32[32,1], index: 5, kind: input, shape index: {}]
  %s6 = inlined_call_operand.vmem [shape: f32[32,1], index: 6, kind: input, shape index: {}]
  %s7 = inlined_call_operand.vmem [shape: f32[32,160], index: 7, kind: input, shape index: {}]
  %s8 = inlined_call_operand.vmem [shape: f32[32,1], index: 8, kind: input, shape index: {}]
  %s9 = inlined_call_operand.vmem [shape: f32[32,1], index: 9, kind: input, shape index: {}]
  %s10 = inlined_call_operand.vmem [shape: f32[32,1], index: 10, kind: input, shape index: {}]
  %s11 = inlined_call_operand.vmem [shape: f32[32,4], index: 11, kind: input, shape index: {}]
  %s12 = inlined_call_operand.vmem [shape: f32[32,1], index: 12, kind: input, shape index: {}]
  %s13 = inlined_call_operand.vmem [shape: f32[32,32], index: 13, kind: input, shape index: {}]
  %s14 = inlined_call_operand.vmem [shape: f32[16,2], index: 14, kind: input, shape index: {}]
  %s15 = inlined_call_operand.vmem [shape: f32[2,16], index: 15, kind: input, shape index: {}]
  %s16 = inlined_call_operand.vmem [shape: f32[5,1,16], index: 16, kind: input, shape index: {}]
  %s17 = inlined_call_operand.vmem [shape: f32[32,16], index: 17, kind: output, shape index: {}]
  %s18 = sld [smem:[#allocation0]]
  $region78: #{tpu_custom_call.1} parent=0
    _
  %s20 = ssub.s32 1, %s18
  %s21 = scalar_select 0, %s20, %s18
  // Predicated region
  $region2: #{tpu_custom_call.1} parent=0 // pred_check
    _
  $region3: #{tpu_custom_call.1} parent=0 // pred_check_branch
    %23 = sbr.rel (0) target = $region5
  $region4: #{tpu_custom_call.1} parent=0 // pred_region
    _
  $region5: #{tpu_custom_call.1} parent=0 // pred_fallthru
    _
  // Predicated region
  $region6: #{tpu_custom_call.1} parent=0 // pred_check
    _
  $region7: #{tpu_custom_call.1} parent=0 // pred_check_branch
    %25 = sbr.rel (0) target = $region9
  $region8: #{tpu_custom_call.1} parent=0 // pred_region
    _
  $region9: #{tpu_custom_call.1} parent=0 // pred_fallthru
    _
  // Predicated region
  $region10: #{tpu_custom_call.1} parent=0 // pred_check
    _
  $region11: #{tpu_custom_call.1} parent=0 // pred_check_branch
    %27 = sbr.rel (0) target = $region13
  $region12: #{tpu_custom_call.1} parent=0 // pred_region
    _
  $region13: #{tpu_custom_call.1} parent=0 // pred_fallthru
    _
  // Predicated region
  $region14: #{tpu_custom_call.1} parent=0 // pred_check
    _
  $region15: #{tpu_custom_call.1} parent=0 // pred_check_branch
    %29 = sbr.rel (0) target = $region17
  $region16: #{tpu_custom_call.1} parent=0 // pred_region
    _
  $region17: #{tpu_custom_call.1} parent=0 // pred_fallthru
    _
  // Predicated region
  $region18: #{tpu_custom_call.1} parent=0 // pred_check
    _
  $region19: #{tpu_custom_call.1} parent=0 // pred_check_branch
    %31 = sbr.rel (0) target = $region21
  $region20: #{tpu_custom_call.1} parent=0 // pred_region
    _
  $region21: #{tpu_custom_call.1} parent=0 // pred_fallthru
    _
  // Predicated region
  $region22: #{tpu_custom_call.1} parent=0 // pred_check
    _
  $region23: #{tpu_custom_call.1} parent=0 // pred_check_branch
    %33 = sbr.rel (0) target = $region25
  $region24: #{tpu_custom_call.1} parent=0 // pred_region
    _
  $region25: #{tpu_custom_call.1} parent=0 // pred_fallthru
    _
  // Predicated region
  $region26: #{tpu_custom_call.1} parent=0 // pred_check
    _
  $region27: #{tpu_custom_call.1} parent=0 // pred_check_branch
    %35 = sbr.rel (0) target = $region29
  $region28: #{tpu_custom_call.1} parent=0 // pred_region
    _
  $region29: #{tpu_custom_call.1} parent=0 // pred_fallthru
    _
  // Predicated region
  $region30: #{tpu_custom_call.1} parent=0 // pred_check
    _
  $region31: #{tpu_custom_call.1} parent=0 // pred_check_branch
    %37 = sbr.rel (0) target = $region33
  $region32: #{tpu_custom_call.1} parent=0 // pred_region
    _
  $region33: #{tpu_custom_call.1} parent=0 // pred_fallthru
    _
  // Predicated region
  $region34: #{tpu_custom_call.1} parent=0 // pred_check
    _
  $region35: #{tpu_custom_call.1} parent=0 // pred_check_branch
    %39 = sbr.rel (0) target = $region37
  $region36: #{tpu_custom_call.1} parent=0 // pred_region
    _
  $region37: #{tpu_custom_call.1} parent=0 // pred_fallthru
    _
  // Predicated region
  $region38: #{tpu_custom_call.1} parent=0 // pred_check
    _
  $region39: #{tpu_custom_call.1} parent=0 // pred_check_branch
    %41 = sbr.rel (0) target = $region41
  $region40: #{tpu_custom_call.1} parent=0 // pred_region
    _
  $region41: #{tpu_custom_call.1} parent=0 // pred_fallthru
    _
  // Predicated region
  $region42: #{tpu_custom_call.1} parent=0 // pred_check
    _
  $region43: #{tpu_custom_call.1} parent=0 // pred_check_branch
    %43 = sbr.rel (0) target = $region45
  $region44: #{tpu_custom_call.1} parent=0 // pred_region
    _
  $region45: #{tpu_custom_call.1} parent=0 // pred_fallthru
    _
  // Predicated region
  $region46: #{tpu_custom_call.1} parent=0 // pred_check
    _
  $region47: #{tpu_custom_call.1} parent=0 // pred_check_branch
    %45 = sbr.rel (0) target = $region49
  $region48: #{tpu_custom_call.1} parent=0 // pred_region
    _
  $region49: #{tpu_custom_call.1} parent=0 // pred_fallthru
    _
  // Predicated region
  $region50: #{tpu_custom_call.1} parent=0 // pred_check
    _
  $region51: #{tpu_custom_call.1} parent=0 // pred_check_branch
    %47 = sbr.rel (0) target = $region53
  $region52: #{tpu_custom_call.1} parent=0 // pred_region
    _
  $region53: #{tpu_custom_call.1} parent=0 // pred_fallthru
    _
  // Predicated region
  $region54: #{tpu_custom_call.1} parent=0 // pred_check
    _
  $region55: #{tpu_custom_call.1} parent=0 // pred_check_branch
    %49 = sbr.rel (0) target = $region57
  $region56: #{tpu_custom_call.1} parent=0 // pred_region
    _
  $region57: #{tpu_custom_call.1} parent=0 // pred_fallthru
    _
  // Predicated region
  $region58: #{tpu_custom_call.1} parent=0 // pred_check
    _
  $region59: #{tpu_custom_call.1} parent=0 // pred_check_branch
    %51 = sbr.rel (0) target = $region61
  $region60: #{tpu_custom_call.1} parent=0 // pred_region
    _
  $region61: #{tpu_custom_call.1} parent=0 // pred_fallthru
    _
  // Predicated region
  $region62: #{tpu_custom_call.1} parent=0 // pred_check
    _
  $region63: #{tpu_custom_call.1} parent=0 // pred_check_branch
    %53 = sbr.rel (0) target = $region65
  $region64: #{tpu_custom_call.1} parent=0 // pred_region
    _
  $region65: #{tpu_custom_call.1} parent=0 // pred_fallthru
    _
  // Predicated region
  $region66: #{tpu_custom_call.1} parent=0 // pred_check
    _
  $region67: #{tpu_custom_call.1} parent=0 // pred_check_branch
    %55 = sbr.rel (0) target = $region69
  $region68: #{tpu_custom_call.1} parent=0 // pred_region
    _
  $region69: #{tpu_custom_call.1} parent=0 // pred_fallthru
    _
  %v56 = vld [vmem:[%s13] sm:$0xff]
  %v57 = vld [vmem:[%s13 + $0x8] sm:$0xff]
  %v58 = vld [vmem:[%s13 + $0x10] sm:$0xff]
  %v59 = vld [vmem:[%s13 + $0x18] sm:$0xff]
  %v60 = vld [vmem:[%s14] sm:$0xff]
  %v61 = vld [vmem:[%s14 + $0x8] sm:$0xff]
  %v62 = vld [vmem:[%s15] sm:$0x3]
  %v63 = vld [vmem:[%s3] sm:$0xff]
  %v64 = vld [vmem:[%s3 + $0x8] sm:$0xff]
  %v65 = vld [vmem:[%s3 + $0x10] sm:$0xff]
  %v66 = vld [vmem:[%s3 + $0x18] sm:$0xff]
  %v67 = vld [vmem:[%s0] sm:$0xff]
  %v68 = vld [vmem:[%s0 + $0x8] sm:$0xff]
  %v69 = vld [vmem:[%s0 + $0x10] sm:$0xf]
  %v70 = vld [vmem:[%s4] sm:$0xff]
  %v71 = vld [vmem:[%s4 + $0x8] sm:$0xff]
  %v72 = vld [vmem:[%s4 + $0x10] sm:$0xff]
  %v73 = vld [vmem:[%s4 + $0x18] sm:$0xff]
  %75 = vset.pattern.permute.xlu0 0
  %76 = vperm.xlu0 %75, %v70
  %v77 = vpop.permute.xlu0 %76
  %80 = vset.pattern.permute.xlu0 0
  %81 = vperm.xlu0 %80, %v71
  %v82 = vpop.permute.xlu0 %81
  %85 = vset.pattern.permute.xlu0 0
  %86 = vperm.xlu0 %85, %v72
  %v87 = vpop.permute.xlu0 %86
  %90 = vset.pattern.permute.xlu0 0
  %91 = vperm.xlu0 %90, %v73
  %v92 = vpop.permute.xlu0 %91
  %vm94 = vcmask 162816
  %v96 = vsel %vm94, %v63, 0
  %v99 = vsel %vm94, %v64, 0
  %v102 = vsel %vm94, %v65, 0
  %v105 = vsel %vm94, %v66, 0
  %vm107 = vcmask 1043456
  %v109 = vsel %vm107, %v69, 0
  %111 = vmatprep.subr.mxu0 0.0
  %112 = vmatpush1.msra.mxu0 0.0
  %113 = vmatprep.subr.mxu0 0.0
  %114 = vmatpush1.msra.mxu0 0.0
  %115 = vmatprep.subr.mxu0 0.0
  %116 = vmatpush1.msra.mxu0 0.0
  %117 = vmatprep.subr.mxu0 0.0
  %118 = vmatpush1.msra.mxu0 0.0
  %119 = vmatprep.subr.mxu0 0.0
  %120 = vmatpush1.msra.mxu0 0.0
  %121 = vmatprep.subr.mxu0 0.0
  %122 = vmatpush1.msra.mxu0 0.0
  %123 = vmatprep.subr.mxu0 0.0
  %124 = vmatpush1.msra.mxu0 0.0
  %125 = vmatprep.subr.mxu0 0.0
  %126 = vmatpush1.msra.mxu0 0.0
  %127 = vmatprep.subr.mxu0 0.0
  %128 = vmatpush1.msra.mxu0 0.0
  %129 = vmatprep.subr.mxu0 0.0
  %130 = vmatpush1.msra.mxu0 0.0
  %131 = vmatprep.subr.mxu0 0.0
  %132 = vmatpush1.msra.mxu0 0.0
  %133 = vmatprep.subr.mxu0 0.0
  %134 = vmatpush1.msra.mxu0 0.0
  %135 = vmatprep.subr.mxu0 0.0
  %136 = vmatpush1.msra.mxu0 0.0
  %137 = vmatprep.subr.mxu0 0.0
  %138 = vmatpush1.msra.mxu0 %v109
  %139 = vmatprep.subr.mxu0 0.0
  %140 = vmatpush1.msra.mxu0 %v68
  %141 = vmatprep.subr.mxu0 0.0
  %142 = vmatpush1.msra.mxu0 %v67
  %143 = vmatprep.subr.mxu0 0.0
  %144 = vmatpush2.msra.mxu0 0.0
  %145 = vmatprep.subr.mxu0 0.0
  %146 = vmatpush2.msra.mxu0 0.0
  %147 = vmatprep.subr.mxu0 0.0
  %148 = vmatpush2.msra.mxu0 0.0
  %149 = vmatprep.subr.mxu0 0.0
  %150 = vmatpush2.msra.mxu0 0.0
  %151 = vmatprep.subr.mxu0 0.0
  %152 = vmatpush2.msra.mxu0 0.0
  %153 = vmatprep.subr.mxu0 0.0
  %154 = vmatpush2.msra.mxu0 0.0
  %155 = vmatprep.subr.mxu0 0.0
  %156 = vmatpush2.msra.mxu0 0.0
  %157 = vmatprep.subr.mxu0 0.0
  %158 = vmatpush2.msra.mxu0 0.0
  %159 = vmatprep.subr.mxu0 0.0
  %160 = vmatpush2.msra.mxu0 0.0
  %161 = vmatprep.subr.mxu0 0.0
  %162 = vmatpush2.msra.mxu0 0.0
  %163 = vmatprep.subr.mxu0 0.0
  %164 = vmatpush2.msra.mxu0 0.0
  %165 = vmatprep.subr.mxu0 0.0
  %166 = vmatpush2.msra.mxu0 0.0
  %167 = vmatprep.subr.mxu0 0.0
  %168 = vmatpush2.msra.mxu0 0.0
  %169 = vmatprep.subr.mxu0 0.0
  %170 = vmatpush2.msra.mxu0 0.0
  %171 = vmatprep.subr.mxu0 0.0
  %172 = vmatpush2.msra.mxu0 0.0
  %173 = vmatprep.subr.mxu0 0.0
  %174 = vmatpush2.msra.mxu0 0.0
  %175 = vmatprep.mubr.f32.mxu0 0.0
  %176 = vmatmul.mubr.f32.gmra.mxu0 %v96
  %v177 = vpop.f32.mrf.mxu0
  %v178 = vadd.f32 %v77, %v177
  %v179 = vpop.f32.mrf.mxu0
  %180 = vmatprep.mubr.f32.mxu0 0.0
  %181 = vmatmul.mubr.f32.gmra.mxu0 %v99
  %v182 = vpop.f32.mrf.mxu0
  %v183 = vadd.f32 %v82, %v182
  %v184 = vpop.f32.mrf.mxu0
  %185 = vmatprep.mubr.f32.mxu0 0.0
  %186 = vmatmul.mubr.f32.gmra.mxu0 %v102
  %v187 = vpop.f32.mrf.mxu0
  %v188 = vadd.f32 %v87, %v187
  %v189 = vpop.f32.mrf.mxu0
  %190 = vmatprep.mubr.f32.mxu0 0.0
  %191 = vmatmul.mubr.f32.gmra.mxu0 %v105
  %v192 = vpop.f32.mrf.mxu0
  %v193 = vadd.f32 %v92, %v192
  %v194 = vpop.f32.mrf.mxu0
  %195 = vdwg.mxu0
  %v196 = vld [vmem:[%s5] sm:$0xff]
  %v197 = vld [vmem:[%s5 + $0x8] sm:$0xff]
  %v198 = vld [vmem:[%s5 + $0x10] sm:$0xff]
  %v199 = vld [vmem:[%s5 + $0x18] sm:$0xff]
  %v200 = vld [vmem:[%s6] sm:$0xff]
  %v201 = vld [vmem:[%s6 + $0x8] sm:$0xff]
  %v202 = vld [vmem:[%s6 + $0x10] sm:$0xff]
  %v203 = vld [vmem:[%s6 + $0x18] sm:$0xff]
  %vm204 = vcmask 130048
  %v206 = vsel %vm204, %v178, 0
  %v209 = vsel %vm204, %v183, 0
  %v212 = vsel %vm204, %v188, 0
  %v215 = vsel %vm204, %v193, 0
  %217 = vmatprep.subr.mxu0 0.0
  %218 = vmatpush1.msra.mxu0 0.0
  %219 = vmatprep.subr.mxu0 0.0
  %220 = vmatpush1.msra.mxu0 0.0
  %221 = vmatprep.subr.mxu0 0.0
  %222 = vmatpush1.msra.mxu0 0.0
  %223 = vmatprep.subr.mxu0 0.0
  %224 = vmatpush1.msra.mxu0 0.0
  %225 = vmatprep.subr.mxu0 0.0
  %226 = vmatpush1.msra.mxu0 0.0
  %227 = vmatprep.subr.mxu0 0.0
  %228 = vmatpush1.msra.mxu0 0.0
  %229 = vmatprep.subr.mxu0 0.0
  %230 = vmatpush1.msra.mxu0 0.0
  %231 = vmatprep.subr.mxu0 0.0
  %232 = vmatpush1.msra.mxu0 0.0
  %233 = vmatprep.subr.mxu0 0.0
  %234 = vmatpush1.msra.mxu0 0.0
  %235 = vmatprep.subr.mxu0 0.0
  %236 = vmatpush1.msra.mxu0 0.0
  %237 = vmatprep.subr.mxu0 0.0
  %238 = vmatpush1.msra.mxu0 0.0
  %239 = vmatprep.subr.mxu0 0.0
  %240 = vmatpush1.msra.mxu0 0.0
  %241 = vmatprep.subr.mxu0 0.0
  %242 = vmatpush1.msra.mxu0 0.0
  %243 = vmatprep.subr.mxu0 0.0
  %244 = vmatpush1.msra.mxu0 0.0
  %245 = vmatprep.subr.mxu0 0.0
  %246 = vmatpush1.msra.mxu0 %v61
  %247 = vmatprep.subr.mxu0 0.0
  %248 = vmatpush1.msra.mxu0 %v60
  %249 = vmatprep.subr.mxu0 0.0
  %250 = vmatpush2.msra.mxu0 0.0
  %251 = vmatprep.subr.mxu0 0.0
  %252 = vmatpush2.msra.mxu0 0.0
  %253 = vmatprep.subr.mxu0 0.0
  %254 = vmatpush2.msra.mxu0 0.0
  %255 = vmatprep.subr.mxu0 0.0
  %256 = vmatpush2.msra.mxu0 0.0
  %257 = vmatprep.subr.mxu0 0.0
  %258 = vmatpush2.msra.mxu0 0.0
  %259 = vmatprep.subr.mxu0 0.0
  %260 = vmatpush2.msra.mxu0 0.0
  %261 = vmatprep.subr.mxu0 0.0
  %262 = vmatpush2.msra.mxu0 0.0
  %263 = vmatprep.subr.mxu0 0.0
  %264 = vmatpush2.msra.mxu0 0.0
  %265 = vmatprep.subr.mxu0 0.0
  %266 = vmatpush2.msra.mxu0 0.0
  %267 = vmatprep.subr.mxu0 0.0
  %268 = vmatpush2.msra.mxu0 0.0
  %269 = vmatprep.subr.mxu0 0.0
  %270 = vmatpush2.msra.mxu0 0.0
  %271 = vmatprep.subr.mxu0 0.0
  %272 = vmatpush2.msra.mxu0 0.0
  %273 = vmatprep.subr.mxu0 0.0
  %274 = vmatpush2.msra.mxu0 0.0
  %275 = vmatprep.subr.mxu0 0.0
  %276 = vmatpush2.msra.mxu0 0.0
  %277 = vmatprep.subr.mxu0 0.0
  %278 = vmatpush2.msra.mxu0 0.0
  %279 = vmatprep.subr.mxu0 0.0
  %280 = vmatpush2.msra.mxu0 0.0
  %281 = vmatprep.mubr.f32.mxu0 0.0
  %282 = vmatmul.mubr.f32.gmra.mxu0 %v206
  %v283 = vpop.f32.mrf.mxu0
  %v284 = vadd.f32 0.0, %v283
  %v285 = vpop.f32.mrf.mxu0
  %286 = vmatprep.mubr.f32.mxu0 0.0
  %287 = vmatmul.mubr.f32.gmra.mxu0 %v209
  %v288 = vpop.f32.mrf.mxu0
  %v289 = vadd.f32 0.0, %v288
  %v290 = vpop.f32.mrf.mxu0
  %291 = vmatprep.mubr.f32.mxu0 0.0
  %292 = vmatmul.mubr.f32.gmra.mxu0 %v212
  %v293 = vpop.f32.mrf.mxu0
  %v294 = vadd.f32 0.0, %v293
  %v295 = vpop.f32.mrf.mxu0
  %296 = vmatprep.mubr.f32.mxu0 0.0
  %297 = vmatmul.mubr.f32.gmra.mxu0 %v215
  %v298 = vpop.f32.mrf.mxu0
  %v299 = vadd.f32 0.0, %v298
  %v300 = vpop.f32.mrf.mxu0
  %301 = vdwg.mxu0
  %vm302 = vcmask 261120
  %v304 = vsel %vm302, %v56, 0
  %v307 = vsel %vm302, %v57, 0
  %v310 = vsel %vm302, %v58, 0
  %v313 = vsel %vm302, %v59, 0
  %315 = vmatprep.subr.mxu0 0.0
  %316 = vmatpush1.msra.mxu0 0.0
  %317 = vmatprep.subr.mxu0 0.0
  %318 = vmatpush1.msra.mxu0 0.0
  %319 = vmatprep.subr.mxu0 0.0
  %320 = vmatpush1.msra.mxu0 0.0
  %321 = vmatprep.subr.mxu0 0.0
  %322 = vmatpush1.msra.mxu0 0.0
  %323 = vmatprep.subr.mxu0 0.0
  %324 = vmatpush1.msra.mxu0 0.0
  %325 = vmatprep.subr.mxu0 0.0
  %326 = vmatpush1.msra.mxu0 0.0
  %327 = vmatprep.subr.mxu0 0.0
  %328 = vmatpush1.msra.mxu0 0.0
  %329 = vmatprep.subr.mxu0 0.0
  %330 = vmatpush1.msra.mxu0 0.0
  %331 = vmatprep.subr.mxu0 0.0
  %332 = vmatpush1.msra.mxu0 0.0
  %333 = vmatprep.subr.mxu0 0.0
  %334 = vmatpush1.msra.mxu0 0.0
  %335 = vmatprep.subr.mxu0 0.0
  %336 = vmatpush1.msra.mxu0 0.0
  %337 = vmatprep.subr.mxu0 0.0
  %338 = vmatpush1.msra.mxu0 0.0
  %339 = vmatprep.subr.mxu0 0.0
  %340 = vmatpush1.msra.mxu0 %v299
  %341 = vmatprep.subr.mxu0 0.0
  %342 = vmatpush1.msra.mxu0 %v294
  %343 = vmatprep.subr.mxu0 0.0
  %344 = vmatpush1.msra.mxu0 %v289
  %345 = vmatprep.subr.mxu0 0.0
  %346 = vmatpush1.msra.mxu0 %v284
  %347 = vmatprep.subr.mxu0 0.0
  %348 = vmatpush2.msra.mxu0 0.0
  %349 = vmatprep.subr.mxu0 0.0
  %350 = vmatpush2.msra.mxu0 0.0
  %351 = vmatprep.subr.mxu0 0.0
  %352 = vmatpush2.msra.mxu0 0.0
  %353 = vmatprep.subr.mxu0 0.0
  %354 = vmatpush2.msra.mxu0 0.0
  %355 = vmatprep.subr.mxu0 0.0
  %356 = vmatpush2.msra.mxu0 0.0
  %357 = vmatprep.subr.mxu0 0.0
  %358 = vmatpush2.msra.mxu0 0.0
  %359 = vmatprep.subr.mxu0 0.0
  %360 = vmatpush2.msra.mxu0 0.0
  %361 = vmatprep.subr.mxu0 0.0
  %362 = vmatpush2.msra.mxu0 0.0
  %363 = vmatprep.subr.mxu0 0.0
  %364 = vmatpush2.msra.mxu0 0.0
  %365 = vmatprep.subr.mxu0 0.0
  %366 = vmatpush2.msra.mxu0 0.0
  %367 = vmatprep.subr.mxu0 0.0
  %368 = vmatpush2.msra.mxu0 0.0
  %369 = vmatprep.subr.mxu0 0.0
  %370 = vmatpush2.msra.mxu0 0.0
  %371 = vmatprep.subr.mxu0 0.0
  %372 = vmatpush2.msra.mxu0 0.0
  %373 = vmatprep.subr.mxu0 0.0
  %374 = vmatpush2.msra.mxu0 0.0
  %375 = vmatprep.subr.mxu0 0.0
  %376 = vmatpush2.msra.mxu0 0.0
  %377 = vmatprep.subr.mxu0 0.0
  %378 = vmatpush2.msra.mxu0 0.0
  %379 = vmatprep.mubr.f32.mxu0 0.0
  %380 = vmatmul.mubr.f32.gmra.mxu0 %v304
  %v381 = vpop.f32.mrf.mxu0
  %v382 = vadd.f32 0.0, %v381
  %v383 = vpop.f32.mrf.mxu0
  %384 = vmatprep.mubr.f32.mxu0 0.0
  %385 = vmatmul.mubr.f32.gmra.mxu0 %v307
  %v386 = vpop.f32.mrf.mxu0
  %v387 = vadd.f32 0.0, %v386
  %v388 = vpop.f32.mrf.mxu0
  %389 = vmatprep.mubr.f32.mxu0 0.0
  %390 = vmatmul.mubr.f32.gmra.mxu0 %v310
  %v391 = vpop.f32.mrf.mxu0
  %v392 = vadd.f32 0.0, %v391
  %v393 = vpop.f32.mrf.mxu0
  %394 = vmatprep.mubr.f32.mxu0 0.0
  %395 = vmatmul.mubr.f32.gmra.mxu0 %v313
  %v396 = vpop.f32.mrf.mxu0
  %v397 = vadd.f32 0.0, %v396
  %v398 = vpop.f32.mrf.mxu0
  %399 = vdwg.mxu0
  %v400 = vmul.f32 %v382, 0.03125
  %v401 = vmul.f32 %v387, 0.03125
  %v402 = vmul.f32 %v392, 0.03125
  %v403 = vmul.f32 %v397, 0.03125
  %vm404 = vcmask 15360
  %v406 = vsel %vm404, %v400, 0
  %v409 = vsel %vm404, %v401, 0
  %v412 = vsel %vm404, %v402, 0
  %v415 = vsel %vm404, %v403, 0
  %vm417 = vcmask 1041408
  %v419 = vsel %vm417, %v62, 0
  %421 = vmatprep.subr.mxu0 0.0
  %422 = vmatpush1.msra.mxu0 0.0
  %423 = vmatprep.subr.mxu0 0.0
  %424 = vmatpush1.msra.mxu0 0.0
  %425 = vmatprep.subr.mxu0 0.0
  %426 = vmatpush1.msra.mxu0 0.0
  %427 = vmatprep.subr.mxu0 0.0
  %428 = vmatpush1.msra.mxu0 0.0
  %429 = vmatprep.subr.mxu0 0.0
  %430 = vmatpush1.msra.mxu0 0.0
  %431 = vmatprep.subr.mxu0 0.0
  %432 = vmatpush1.msra.mxu0 0.0
  %433 = vmatprep.subr.mxu0 0.0
  %434 = vmatpush1.msra.mxu0 0.0
  %435 = vmatprep.subr.mxu0 0.0
  %436 = vmatpush1.msra.mxu0 0.0
  %437 = vmatprep.subr.mxu0 0.0
  %438 = vmatpush1.msra.mxu0 0.0
  %439 = vmatprep.subr.mxu0 0.0
  %440 = vmatpush1.msra.mxu0 0.0
  %441 = vmatprep.subr.mxu0 0.0
  %442 = vmatpush1.msra.mxu0 0.0
  %443 = vmatprep.subr.mxu0 0.0
  %444 = vmatpush1.msra.mxu0 0.0
  %445 = vmatprep.subr.mxu0 0.0
  %446 = vmatpush1.msra.mxu0 0.0
  %447 = vmatprep.subr.mxu0 0.0
  %448 = vmatpush1.msra.mxu0 0.0
  %449 = vmatprep.subr.mxu0 0.0
  %450 = vmatpush1.msra.mxu0 0.0
  %451 = vmatprep.subr.mxu0 0.0
  %452 = vmatpush1.msra.mxu0 %v419
  %453 = vmatprep.subr.mxu0 0.0
  %454 = vmatpush2.msra.mxu0 0.0
  %455 = vmatprep.subr.mxu0 0.0
  %456 = vmatpush2.msra.mxu0 0.0
  %457 = vmatprep.subr.mxu0 0.0
  %458 = vmatpush2.msra.mxu0 0.0
  %459 = vmatprep.subr.mxu0 0.0
  %460 = vmatpush2.msra.mxu0 0.0
  %461 = vmatprep.subr.mxu0 0.0
  %462 = vmatpush2.msra.mxu0 0.0
  %463 = vmatprep.subr.mxu0 0.0
  %464 = vmatpush2.msra.mxu0 0.0
  %465 = vmatprep.subr.mxu0 0.0
  %466 = vmatpush2.msra.mxu0 0.0
  %467 = vmatprep.subr.mxu0 0.0
  %468 = vmatpush2.msra.mxu0 0.0
  %469 = vmatprep.subr.mxu0 0.0
  %470 = vmatpush2.msra.mxu0 0.0
  %471 = vmatprep.subr.mxu0 0.0
  %472 = vmatpush2.msra.mxu0 0.0
  %473 = vmatprep.subr.mxu0 0.0
  %474 = vmatpush2.msra.mxu0 0.0
  %475 = vmatprep.subr.mxu0 0.0
  %476 = vmatpush2.msra.mxu0 0.0
  %477 = vmatprep.subr.mxu0 0.0
  %478 = vmatpush2.msra.mxu0 0.0
  %479 = vmatprep.subr.mxu0 0.0
  %480 = vmatpush2.msra.mxu0 0.0
  %481 = vmatprep.subr.mxu0 0.0
  %482 = vmatpush2.msra.mxu0 0.0
  %483 = vmatprep.subr.mxu0 0.0
  %484 = vmatpush2.msra.mxu0 0.0
  %485 = vmatprep.mubr.f32.mxu0 0.0
  %486 = vmatmul.mubr.f32.gmra.mxu0 %v406
  %v487 = vpop.f32.mrf.mxu0
  %v488 = vadd.f32 0.0, %v487
  %v489 = vpop.f32.mrf.mxu0
  %490 = vmatprep.mubr.f32.mxu0 0.0
  %491 = vmatmul.mubr.f32.gmra.mxu0 %v409
  %v492 = vpop.f32.mrf.mxu0
  %v493 = vadd.f32 0.0, %v492
  %v494 = vpop.f32.mrf.mxu0
  %495 = vmatprep.mubr.f32.mxu0 0.0
  %496 = vmatmul.mubr.f32.gmra.mxu0 %v412
  %v497 = vpop.f32.mrf.mxu0
  %v498 = vadd.f32 0.0, %v497
  %v499 = vpop.f32.mrf.mxu0
  %500 = vmatprep.mubr.f32.mxu0 0.0
  %501 = vmatmul.mubr.f32.gmra.mxu0 %v415
  %v502 = vpop.f32.mrf.mxu0
  %v503 = vadd.f32 0.0, %v502
  %v504 = vpop.f32.mrf.mxu0
  %505 = vdwg.mxu0
  %v506 = vsub.f32 %v178, %v488
  %v507 = vsub.f32 %v183, %v493
  %v508 = vsub.f32 %v188, %v498
  %v509 = vsub.f32 %v193, %v503
  %v510 = vmul.f32 %v506, %v506
  %v511 = vmul.f32 %v507, %v507
  %v512 = vmul.f32 %v508, %v508
  %v513 = vmul.f32 %v509, %v509
  %v515 = vsel %vm204, %v510, 0
  %v518 = vsel %vm204, %v511, 0
  %v521 = vsel %vm204, %v512, 0
  %v524 = vsel %vm204, %v513, 0
  %526 = vmatprep.subr.mxu0 0.0
  %527 = vmatpush1.msra.mxu0 0.0
  %528 = vmatprep.subr.mxu0 0.0
  %529 = vmatpush1.msra.mxu0 0.0
  %530 = vmatprep.subr.mxu0 0.0
  %531 = vmatpush1.msra.mxu0 0.0
  %532 = vmatprep.subr.mxu0 0.0
  %533 = vmatpush1.msra.mxu0 0.0
  %534 = vmatprep.subr.mxu0 0.0
  %535 = vmatpush1.msra.mxu0 0.0
  %536 = vmatprep.subr.mxu0 0.0
  %537 = vmatpush1.msra.mxu0 0.0
  %538 = vmatprep.subr.mxu0 0.0
  %539 = vmatpush1.msra.mxu0 0.0
  %540 = vmatprep.subr.mxu0 0.0
  %541 = vmatpush1.msra.mxu0 0.0
  %542 = vmatprep.subr.mxu0 0.0
  %543 = vmatpush1.msra.mxu0 0.0
  %544 = vmatprep.subr.mxu0 0.0
  %545 = vmatpush1.msra.mxu0 0.0
  %546 = vmatprep.subr.mxu0 0.0
  %547 = vmatpush1.msra.mxu0 0.0
  %548 = vmatprep.subr.mxu0 0.0
  %549 = vmatpush1.msra.mxu0 0.0
  %550 = vmatprep.subr.mxu0 0.0
  %551 = vmatpush1.msra.mxu0 0.0
  %552 = vmatprep.subr.mxu0 0.0
  %553 = vmatpush1.msra.mxu0 0.0
  %554 = vmatprep.subr.mxu0 0.0
  %555 = vmatpush1.msra.mxu0 %v61
  %556 = vmatprep.subr.mxu0 0.0
  %557 = vmatpush1.msra.mxu0 %v60
  %558 = vmatprep.subr.mxu0 0.0
  %559 = vmatpush2.msra.mxu0 0.0
  %560 = vmatprep.subr.mxu0 0.0
  %561 = vmatpush2.msra.mxu0 0.0
  %562 = vmatprep.subr.mxu0 0.0
  %563 = vmatpush2.msra.mxu0 0.0
  %564 = vmatprep.subr.mxu0 0.0
  %565 = vmatpush2.msra.mxu0 0.0
  %566 = vmatprep.subr.mxu0 0.0
  %567 = vmatpush2.msra.mxu0 0.0
  %568 = vmatprep.subr.mxu0 0.0
  %569 = vmatpush2.msra.mxu0 0.0
  %570 = vmatprep.subr.mxu0 0.0
  %571 = vmatpush2.msra.mxu0 0.0
  %572 = vmatprep.subr.mxu0 0.0
  %573 = vmatpush2.msra.mxu0 0.0
  %574 = vmatprep.subr.mxu0 0.0
  %575 = vmatpush2.msra.mxu0 0.0
  %576 = vmatprep.subr.mxu0 0.0
  %577 = vmatpush2.msra.mxu0 0.0
  %578 = vmatprep.subr.mxu0 0.0
  %579 = vmatpush2.msra.mxu0 0.0
  %580 = vmatprep.subr.mxu0 0.0
  %581 = vmatpush2.msra.mxu0 0.0
  %582 = vmatprep.subr.mxu0 0.0
  %583 = vmatpush2.msra.mxu0 0.0
  %584 = vmatprep.subr.mxu0 0.0
  %585 = vmatpush2.msra.mxu0 0.0
  %586 = vmatprep.subr.mxu0 0.0
  %587 = vmatpush2.msra.mxu0 0.0
  %588 = vmatprep.subr.mxu0 0.0
  %589 = vmatpush2.msra.mxu0 0.0
  %590 = vmatprep.mubr.f32.mxu0 0.0
  %591 = vmatmul.mubr.f32.gmra.mxu0 %v515
  %v592 = vpop.f32.mrf.mxu0
  %v593 = vadd.f32 0.0, %v592
  %v594 = vpop.f32.mrf.mxu0
  %595 = vmatprep.mubr.f32.mxu0 0.0
  %596 = vmatmul.mubr.f32.gmra.mxu0 %v518
  %v597 = vpop.f32.mrf.mxu0
  %v598 = vadd.f32 0.0, %v597
  %v599 = vpop.f32.mrf.mxu0
  %600 = vmatprep.mubr.f32.mxu0 0.0
  %601 = vmatmul.mubr.f32.gmra.mxu0 %v521
  %v602 = vpop.f32.mrf.mxu0
  %v603 = vadd.f32 0.0, %v602
  %v604 = vpop.f32.mrf.mxu0
  %605 = vmatprep.mubr.f32.mxu0 0.0
  %606 = vmatmul.mubr.f32.gmra.mxu0 %v524
  %v607 = vpop.f32.mrf.mxu0
  %v608 = vadd.f32 0.0, %v607
  %v609 = vpop.f32.mrf.mxu0
  %610 = vdwg.mxu0
  %611 = vmatprep.subr.mxu0 0.0
  %612 = vmatpush1.msra.mxu0 0.0
  %613 = vmatprep.subr.mxu0 0.0
  %614 = vmatpush1.msra.mxu0 0.0
  %615 = vmatprep.subr.mxu0 0.0
  %616 = vmatpush1.msra.mxu0 0.0
  %617 = vmatprep.subr.mxu0 0.0
  %618 = vmatpush1.msra.mxu0 0.0
  %619 = vmatprep.subr.mxu0 0.0
  %620 = vmatpush1.msra.mxu0 0.0
  %621 = vmatprep.subr.mxu0 0.0
  %622 = vmatpush1.msra.mxu0 0.0
  %623 = vmatprep.subr.mxu0 0.0
  %624 = vmatpush1.msra.mxu0 0.0
  %625 = vmatprep.subr.mxu0 0.0
  %626 = vmatpush1.msra.mxu0 0.0
  %627 = vmatprep.subr.mxu0 0.0
  %628 = vmatpush1.msra.mxu0 0.0
  %629 = vmatprep.subr.mxu0 0.0
  %630 = vmatpush1.msra.mxu0 0.0
  %631 = vmatprep.subr.mxu0 0.0
  %632 = vmatpush1.msra.mxu0 0.0
  %633 = vmatprep.subr.mxu0 0.0
  %634 = vmatpush1.msra.mxu0 0.0
  %635 = vmatprep.subr.mxu0 0.0
  %636 = vmatpush1.msra.mxu0 %v608
  %637 = vmatprep.subr.mxu0 0.0
  %638 = vmatpush1.msra.mxu0 %v603
  %639 = vmatprep.subr.mxu0 0.0
  %640 = vmatpush1.msra.mxu0 %v598
  %641 = vmatprep.subr.mxu0 0.0
  %642 = vmatpush1.msra.mxu0 %v593
  %643 = vmatprep.subr.mxu0 0.0
  %644 = vmatpush2.msra.mxu0 0.0
  %645 = vmatprep.subr.mxu0 0.0
  %646 = vmatpush2.msra.mxu0 0.0
  %647 = vmatprep.subr.mxu0 0.0
  %648 = vmatpush2.msra.mxu0 0.0
  %649 = vmatprep.subr.mxu0 0.0
  %650 = vmatpush2.msra.mxu0 0.0
  %651 = vmatprep.subr.mxu0 0.0
  %652 = vmatpush2.msra.mxu0 0.0
  %653 = vmatprep.subr.mxu0 0.0
  %654 = vmatpush2.msra.mxu0 0.0
  %655 = vmatprep.subr.mxu0 0.0
  %656 = vmatpush2.msra.mxu0 0.0
  %657 = vmatprep.subr.mxu0 0.0
  %658 = vmatpush2.msra.mxu0 0.0
  %659 = vmatprep.subr.mxu0 0.0
  %660 = vmatpush2.msra.mxu0 0.0
  %661 = vmatprep.subr.mxu0 0.0
  %662 = vmatpush2.msra.mxu0 0.0
  %663 = vmatprep.subr.mxu0 0.0
  %664 = vmatpush2.msra.mxu0 0.0
  %665 = vmatprep.subr.mxu0 0.0
  %666 = vmatpush2.msra.mxu0 0.0
  %667 = vmatprep.subr.mxu0 0.0
  %668 = vmatpush2.msra.mxu0 0.0
  %669 = vmatprep.subr.mxu0 0.0
  %670 = vmatpush2.msra.mxu0 0.0
  %671 = vmatprep.subr.mxu0 0.0
  %672 = vmatpush2.msra.mxu0 0.0
  %673 = vmatprep.subr.mxu0 0.0
  %674 = vmatpush2.msra.mxu0 0.0
  %675 = vmatprep.mubr.f32.mxu0 0.0
  %676 = vmatmul.mubr.f32.gmra.mxu0 %v304
  %v677 = vpop.f32.mrf.mxu0
  %v678 = vadd.f32 0.0, %v677
  %v679 = vpop.f32.mrf.mxu0
  %680 = vmatprep.mubr.f32.mxu0 0.0
  %681 = vmatmul.mubr.f32.gmra.mxu0 %v307
  %v682 = vpop.f32.mrf.mxu0
  %v683 = vadd.f32 0.0, %v682
  %v684 = vpop.f32.mrf.mxu0
  %685 = vmatprep.mubr.f32.mxu0 0.0
  %686 = vmatmul.mubr.f32.gmra.mxu0 %v310
  %v687 = vpop.f32.mrf.mxu0
  %v688 = vadd.f32 0.0, %v687
  %v689 = vpop.f32.mrf.mxu0
  %690 = vmatprep.mubr.f32.mxu0 0.0
  %691 = vmatmul.mubr.f32.gmra.mxu0 %v313
  %v692 = vpop.f32.mrf.mxu0
  %v693 = vadd.f32 0.0, %v692
  %v694 = vpop.f32.mrf.mxu0
  %695 = vdwg.mxu0
  %v696 = vmul.f32 %v678, 0.03125
  %v697 = vmul.f32 %v683, 0.03125
  %v698 = vmul.f32 %v688, 0.03125
  %v699 = vmul.f32 %v693, 0.03125
  %v700 = vadd.f32 %v696, 1e-05
  %v701 = vadd.f32 %v697, 1e-05
  %v702 = vadd.f32 %v698, 1e-05
  %v703 = vadd.f32 %v699, 1e-05
  %v704 = vrsqrt.pop %v700
  %v705 = vrsqrt.pop %v701
  %v706 = vrsqrt.pop %v702
  %v707 = vrsqrt.pop %v703
  %v709 = vsel %vm404, %v704, 0
  %v712 = vsel %vm404, %v705, 0
  %v715 = vsel %vm404, %v706, 0
  %v718 = vsel %vm404, %v707, 0
  %720 = vmatprep.subr.mxu0 0.0
  %721 = vmatpush1.msra.mxu0 0.0
  %722 = vmatprep.subr.mxu0 0.0
  %723 = vmatpush1.msra.mxu0 0.0
  %724 = vmatprep.subr.mxu0 0.0
  %725 = vmatpush1.msra.mxu0 0.0
  %726 = vmatprep.subr.mxu0 0.0
  %727 = vmatpush1.msra.mxu0 0.0
  %728 = vmatprep.subr.mxu0 0.0
  %729 = vmatpush1.msra.mxu0 0.0
  %730 = vmatprep.subr.mxu0 0.0
  %731 = vmatpush1.msra.mxu0 0.0
  %732 = vmatprep.subr.mxu0 0.0
  %733 = vmatpush1.msra.mxu0 0.0
  %734 = vmatprep.subr.mxu0 0.0
  %735 = vmatpush1.msra.mxu0 0.0
  %736 = vmatprep.subr.mxu0 0.0
  %737 = vmatpush1.msra.mxu0 0.0
  %738 = vmatprep.subr.mxu0 0.0
  %739 = vmatpush1.msra.mxu0 0.0
  %740 = vmatprep.subr.mxu0 0.0
  %741 = vmatpush1.msra.mxu0 0.0
  %742 = vmatprep.subr.mxu0 0.0
  %743 = vmatpush1.msra.mxu0 0.0
  %744 = vmatprep.subr.mxu0 0.0
  %745 = vmatpush1.msra.mxu0 0.0
  %746 = vmatprep.subr.mxu0 0.0
  %747 = vmatpush1.msra.mxu0 0.0
  %748 = vmatprep.subr.mxu0 0.0
  %749 = vmatpush1.msra.mxu0 0.0
  %750 = vmatprep.subr.mxu0 0.0
  %751 = vmatpush1.msra.mxu0 %v419
  %752 = vmatprep.subr.mxu0 0.0
  %753 = vmatpush2.msra.mxu0 0.0
  %754 = vmatprep.subr.mxu0 0.0
  %755 = vmatpush2.msra.mxu0 0.0
  %756 = vmatprep.subr.mxu0 0.0
  %757 = vmatpush2.msra.mxu0 0.0
  %758 = vmatprep.subr.mxu0 0.0
  %759 = vmatpush2.msra.mxu0 0.0
  %760 = vmatprep.subr.mxu0 0.0
  %761 = vmatpush2.msra.mxu0 0.0
  %762 = vmatprep.subr.mxu0 0.0
  %763 = vmatpush2.msra.mxu0 0.0
  %764 = vmatprep.subr.mxu0 0.0
  %765 = vmatpush2.msra.mxu0 0.0
  %766 = vmatprep.subr.mxu0 0.0
  %767 = vmatpush2.msra.mxu0 0.0
  %768 = vmatprep.subr.mxu0 0.0
  %769 = vmatpush2.msra.mxu0 0.0
  %770 = vmatprep.subr.mxu0 0.0
  %771 = vmatpush2.msra.mxu0 0.0
  %772 = vmatprep.subr.mxu0 0.0
  %773 = vmatpush2.msra.mxu0 0.0
  %774 = vmatprep.subr.mxu0 0.0
  %775 = vmatpush2.msra.mxu0 0.0
  %776 = vmatprep.subr.mxu0 0.0
  %777 = vmatpush2.msra.mxu0 0.0
  %778 = vmatprep.subr.mxu0 0.0
  %779 = vmatpush2.msra.mxu0 0.0
  %780 = vmatprep.subr.mxu0 0.0
  %781 = vmatpush2.msra.mxu0 0.0
  %782 = vmatprep.subr.mxu0 0.0
  %783 = vmatpush2.msra.mxu0 0.0
  %784 = vmatprep.mubr.f32.mxu0 0.0
  %785 = vmatmul.mubr.f32.gmra.mxu0 %v709
  %v786 = vpop.f32.mrf.mxu0
  %v787 = vadd.f32 0.0, %v786
  %v788 = vpop.f32.mrf.mxu0
  %789 = vmatprep.mubr.f32.mxu0 0.0
  %790 = vmatmul.mubr.f32.gmra.mxu0 %v712
  %v791 = vpop.f32.mrf.mxu0
  %v792 = vadd.f32 0.0, %v791
  %v793 = vpop.f32.mrf.mxu0
  %794 = vmatprep.mubr.f32.mxu0 0.0
  %795 = vmatmul.mubr.f32.gmra.mxu0 %v715
  %v796 = vpop.f32.mrf.mxu0
  %v797 = vadd.f32 0.0, %v796
  %v798 = vpop.f32.mrf.mxu0
  %799 = vmatprep.mubr.f32.mxu0 0.0
  %800 = vmatmul.mubr.f32.gmra.mxu0 %v718
  %v801 = vpop.f32.mrf.mxu0
  %v802 = vadd.f32 0.0, %v801
  %v803 = vpop.f32.mrf.mxu0
  %804 = vdwg.mxu0
  %v805 = vmul.f32 %v506, %v787
  %v806 = vmul.f32 %v507, %v792
  %v807 = vmul.f32 %v508, %v797
  %v808 = vmul.f32 %v509, %v802
  %810 = vset.pattern.permute.xlu0 0
  %811 = vperm.xlu0 %810, %v196
  %v812 = vpop.permute.xlu0 %811
  %815 = vset.pattern.permute.xlu0 0
  %816 = vperm.xlu0 %815, %v197
  %v817 = vpop.permute.xlu0 %816
  %820 = vset.pattern.permute.xlu0 0
  %821 = vperm.xlu0 %820, %v198
  %v822 = vpop.permute.xlu0 %821
  %825 = vset.pattern.permute.xlu0 0
  %826 = vperm.xlu0 %825, %v199
  %v827 = vpop.permute.xlu0 %826
  %v829 = vmul.f32 %v805, %v812
  %v830 = vmul.f32 %v806, %v817
  %v831 = vmul.f32 %v807, %v822
  %v832 = vmul.f32 %v808, %v827
  %834 = vset.pattern.permute.xlu0 0
  %835 = vperm.xlu0 %834, %v200
  %v836 = vpop.permute.xlu0 %835
  %839 = vset.pattern.permute.xlu0 0
  %840 = vperm.xlu0 %839, %v201
  %v841 = vpop.permute.xlu0 %840
  %844 = vset.pattern.permute.xlu0 0
  %845 = vperm.xlu0 %844, %v202
  %v846 = vpop.permute.xlu0 %845
  %849 = vset.pattern.permute.xlu0 0
  %850 = vperm.xlu0 %849, %v203
  %v851 = vpop.permute.xlu0 %850
  %v853 = vadd.f32 %v829, %v836
  %v854 = vadd.f32 %v830, %v841
  %v855 = vadd.f32 %v831, %v846
  %v856 = vadd.f32 %v832, %v851
  %v857 = vmax.f32 %v853, 0.0
  %v858 = vmax.f32 %v854, 0.0
  %v859 = vmax.f32 %v855, 0.0
  %v860 = vmax.f32 %v856, 0.0
  %vm861 = vcmp.ne.f32.partialorder %v853, %v853
  %vm862 = vcmp.ne.f32.partialorder %v854, %v854
  %vm863 = vcmp.ne.f32.partialorder %v855, %v855
  %vm864 = vcmp.ne.f32.partialorder %v856, %v856
  %v865 = vadd.f32 %v853, 0.0
  %v866 = vadd.f32 %v854, 0.0
  %v867 = vadd.f32 %v855, 0.0
  %v868 = vadd.f32 %v856, 0.0
  %v869 = vand.u32 2147483647, %v853
  %v870 = vand.u32 2147483647, %v854
  %v871 = vand.u32 2147483647, %v855
  %v872 = vand.u32 2147483647, %v856
  %v873 = vsub.f32 0.0, %v869
  %v874 = vsub.f32 0.0, %v870
  %v875 = vsub.f32 0.0, %v871
  %v876 = vsub.f32 0.0, %v872
  %v877 = vmul.f32 %v873, 1.442695
  %v878 = vpow.pop %v877
  %v879 = vmul.f32 %v874, 1.442695
  %v880 = vpow.pop %v879
  %v881 = vmul.f32 %v875, 1.442695
  %v882 = vpow.pop %v881
  %v883 = vmul.f32 %v876, 1.442695
  %v884 = vpow.pop %v883
  %v885 = vadd.f32 %v878, 1.0
  %v886 = vlog2.pop %v885
  %v887 = vmul.f32 %v886, 0.6931472
  %v888 = vmul.f32 -0.5, %v878
  %v889 = vadd.f32 %v888, 1.0
  %v890 = vmul.f32 %v889, %v878
  %v891 = vand.u32 2147483647, %v878
  %vm892 = vcmp.lt.f32.partialorder %v891, 0.0004427343
  %v893 = vsel %vm892, %v890, %v887
  %v894 = vadd.f32 %v880, 1.0
  %v895 = vlog2.pop %v894
  %v896 = vmul.f32 %v895, 0.6931472
  %v897 = vmul.f32 -0.5, %v880
  %v898 = vadd.f32 %v897, 1.0
  %v899 = vmul.f32 %v898, %v880
  %v900 = vand.u32 2147483647, %v880
  %vm901 = vcmp.lt.f32.partialorder %v900, 0.0004427343
  %v902 = vsel %vm901, %v899, %v896
  %v903 = vadd.f32 %v882, 1.0
  %v904 = vlog2.pop %v903
  %v905 = vmul.f32 %v904, 0.6931472
  %v906 = vmul.f32 -0.5, %v882
  %v907 = vadd.f32 %v906, 1.0
  %v908 = vmul.f32 %v907, %v882
  %v909 = vand.u32 2147483647, %v882
  %vm910 = vcmp.lt.f32.partialorder %v909, 0.0004427343
  %v911 = vsel %vm910, %v908, %v905
  %v912 = vadd.f32 %v884, 1.0
  %v913 = vlog2.pop %v912
  %v914 = vmul.f32 %v913, 0.6931472
  %v915 = vmul.f32 -0.5, %v884
  %v916 = vadd.f32 %v915, 1.0
  %v917 = vmul.f32 %v916, %v884
  %v918 = vand.u32 2147483647, %v884
  %vm919 = vcmp.lt.f32.partialorder %v918, 0.0004427343
  %v920 = vsel %vm919, %v917, %v914
  %v921 = vadd.f32 %v857, %v893
  %v922 = vadd.f32 %v858, %v902
  %v923 = vadd.f32 %v859, %v911
  %v924 = vadd.f32 %v860, %v920
  %v925 = vsel %vm861, %v865, %v921
  %v926 = vsel %vm862, %v866, %v922
  %v927 = vsel %vm863, %v867, %v923
  %v928 = vsel %vm864, %v868, %v924
  %v929 = vtanh.pop %v925
  %v930 = vtanh.pop %v926
  %v931 = vtanh.pop %v927
  %v932 = vtanh.pop %v928
  %v933 = vmul.f32 %v853, %v929
  %v934 = vmul.f32 %v854, %v930
  %v935 = vmul.f32 %v855, %v931
  %v936 = vmul.f32 %v856, %v932
  %v937 = vld [vmem:[%s2] sm:$0xff]
  %v938 = vld [vmem:[%s2 + $0x8] sm:$0xff]
  %v939 = vld [vmem:[%s2 + $0x10] sm:$0xff]
  %v940 = vld [vmem:[%s2 + $0x18] sm:$0xff]
  %v941 = vadd.f32 %v933, %v937
  %v942 = vadd.f32 %v934, %v938
  %v943 = vadd.f32 %v935, %v939
  %v944 = vadd.f32 %v936, %v940
  %945 = vst.msk [vmem:[#allocation2] sm:$0xff] %vm404, 0.0
  %946 = vst.msk [vmem:[#allocation2 + $0x8] sm:$0xff] %vm404, 0.0
  %947 = vst.msk [vmem:[#allocation2 + $0x10] sm:$0xff] %vm404, 0.0
  %948 = vst.msk [vmem:[#allocation2 + $0x18] sm:$0xff] %vm404, 0.0
  %vm949 = vcmask 162960
  %950 = vst.msk [vmem:[#allocation2] sm:$0xff] %vm949, 0.0
  %951 = vst.msk [vmem:[#allocation2 + $0x8] sm:$0xff] %vm949, 0.0
  %952 = vst.msk [vmem:[#allocation2 + $0x10] sm:$0xff] %vm949, 0.0
  %953 = vst.msk [vmem:[#allocation2 + $0x18] sm:$0xff] %vm949, 0.0
  %958 = vrot.lane.b32.xlu0 %v941, 2
  %v959 = vpop.permute.xlu0 %958
  %960 = vrot.lane.b32.xlu0 %v942, 2
  %v961 = vpop.permute.xlu0 %960
  %962 = vrot.lane.b32.xlu0 %v943, 2
  %v963 = vpop.permute.xlu0 %962
  %964 = vrot.lane.b32.xlu0 %v944, 2
  %v965 = vpop.permute.xlu0 %964
  %vm970 = vcmask 146448
  %971 = vst.msk [vmem:[#allocation2] sm:$0xff] %vm970, %v959
  %972 = vst.msk [vmem:[#allocation2 + $0x8] sm:$0xff] %vm970, %v961
  %973 = vst.msk [vmem:[#allocation2 + $0x10] sm:$0xff] %vm970, %v963
  %974 = vst.msk [vmem:[#allocation2 + $0x18] sm:$0xff] %vm970, %v965
  %v975 = vld [vmem:[#allocation2] sm:$0xff]
  %v976 = vld [vmem:[#allocation2 + $0x8] sm:$0xff]
  %v977 = vld [vmem:[#allocation2 + $0x10] sm:$0xff]
  %v978 = vld [vmem:[#allocation2 + $0x18] sm:$0xff]
  %v979 = vld [vmem:[%s16] sm:$0x1]
  %v981 = vlaneseq
  %v982 = vshrl.u32 %v981, 7
  %v983 = vsub.s32 0, %v982
  %v984 = vrot.slane %v979, %v983
  %v986 = vmul.f32 %v975, %v984
  %v987 = vmul.f32 %v976, %v984
  %v988 = vmul.f32 %v977, %v984
  %v989 = vmul.f32 %v978, %v984
  %990 = vst.msk [vmem:[#allocation3] sm:$0xff] %vm204, %v986
  %991 = vst.msk [vmem:[#allocation3 + $0x8] sm:$0xff] %vm204, %v987
  %992 = vst.msk [vmem:[#allocation3 + $0x10] sm:$0xff] %vm204, %v988
  %993 = vst.msk [vmem:[#allocation3 + $0x18] sm:$0xff] %vm204, %v989
  %s994 = scalar_lea.vmem %s16, 1
  %v995 = vld [vmem:[%s994] sm:$0x1]
  %v997 = vlaneseq
  %v998 = vshrl.u32 %v997, 7
  %v999 = vsub.s32 0, %v998
  %v1000 = vrot.slane %v995, %v999
  %1001 = vrot.lane.b32.xlu0 %v1000, 1
  %v1002 = vpop.permute.xlu0 %1001
  %v1004 = vmul.f32 %v975, %v1002
  %v1005 = vmul.f32 %v976, %v1002
  %v1006 = vmul.f32 %v977, %v1002
  %v1007 = vmul.f32 %v978, %v1002
  %1012 = vrot.lane.b32.xlu0 %v1004, 127
  %v1013 = vpop.permute.xlu0 %1012
  %1014 = vrot.lane.b32.xlu0 %v1005, 127
  %v1015 = vpop.permute.xlu0 %1014
  %1016 = vrot.lane.b32.xlu0 %v1006, 127
  %v1017 = vpop.permute.xlu0 %1016
  %1018 = vrot.lane.b32.xlu0 %v1007, 127
  %v1019 = vpop.permute.xlu0 %1018
  %1024 = vst.msk [vmem:[#allocation3 + $0x20] sm:$0xff] %vm204, %v1013
  %1025 = vst.msk [vmem:[#allocation3 + $0x28] sm:$0xff] %vm204, %v1015
  %1026 = vst.msk [vmem:[#allocation3 + $0x30] sm:$0xff] %vm204, %v1017
  %1027 = vst.msk [vmem:[#allocation3 + $0x38] sm:$0xff] %vm204, %v1019
  %1032 = vrot.lane.b32.xlu0 %v975, 126
  %v1033 = vpop.permute.xlu0 %1032
  %1034 = vrot.lane.b32.xlu0 %v976, 126
  %v1035 = vpop.permute.xlu0 %1034
  %1036 = vrot.lane.b32.xlu0 %v977, 126
  %v1037 = vpop.permute.xlu0 %1036
  %1038 = vrot.lane.b32.xlu0 %v978, 126
  %v1039 = vpop.permute.xlu0 %1038
  %1044 = vst.msk [vmem:[#allocation3 + $0x40] sm:$0xff] %vm204, %v1033
  %1045 = vst.msk [vmem:[#allocation3 + $0x48] sm:$0xff] %vm204, %v1035
  %1046 = vst.msk [vmem:[#allocation3 + $0x50] sm:$0xff] %vm204, %v1037
  %1047 = vst.msk [vmem:[#allocation3 + $0x58] sm:$0xff] %vm204, %v1039
  %s1048 = scalar_lea.vmem %s16, 3
  %v1049 = vld [vmem:[%s1048] sm:$0x1]
  %v1051 = vlaneseq
  %v1052 = vshrl.u32 %v1051, 7
  %v1053 = vsub.s32 0, %v1052
  %v1054 = vrot.slane %v1049, %v1053
  %1055 = vrot.lane.b32.xlu0 %v1054, 3
  %v1056 = vpop.permute.xlu0 %1055
  %v1058 = vmul.f32 %v975, %v1056
  %v1059 = vmul.f32 %v976, %v1056
  %v1060 = vmul.f32 %v977, %v1056
  %v1061 = vmul.f32 %v978, %v1056
  %1066 = vrot.lane.b32.xlu0 %v1058, 125
  %v1067 = vpop.permute.xlu0 %1066
  %1068 = vrot.lane.b32.xlu0 %v1059, 125
  %v1069 = vpop.permute.xlu0 %1068
  %1070 = vrot.lane.b32.xlu0 %v1060, 125
  %v1071 = vpop.permute.xlu0 %1070
  %1072 = vrot.lane.b32.xlu0 %v1061, 125
  %v1073 = vpop.permute.xlu0 %1072
  %1078 = vst.msk [vmem:[#allocation3 + $0x60] sm:$0xff] %vm204, %v1067
  %1079 = vst.msk [vmem:[#allocation3 + $0x68] sm:$0xff] %vm204, %v1069
  %1080 = vst.msk [vmem:[#allocation3 + $0x70] sm:$0xff] %vm204, %v1071
  %1081 = vst.msk [vmem:[#allocation3 + $0x78] sm:$0xff] %vm204, %v1073
  %s1082 = scalar_lea.vmem %s16, 4
  %v1083 = vld [vmem:[%s1082] sm:$0x1]
  %v1085 = vlaneseq
  %v1086 = vshrl.u32 %v1085, 7
  %v1087 = vsub.s32 0, %v1086
  %v1088 = vrot.slane %v1083, %v1087
  %1089 = vrot.lane.b32.xlu0 %v1088, 4
  %v1090 = vpop.permute.xlu0 %1089
  %v1092 = vmul.f32 %v975, %v1090
  %v1093 = vmul.f32 %v976, %v1090
  %v1094 = vmul.f32 %v977, %v1090
  %v1095 = vmul.f32 %v978, %v1090
  %1100 = vrot.lane.b32.xlu0 %v1092, 124
  %v1101 = vpop.permute.xlu0 %1100
  %1102 = vrot.lane.b32.xlu0 %v1093, 124
  %v1103 = vpop.permute.xlu0 %1102
  %1104 = vrot.lane.b32.xlu0 %v1094, 124
  %v1105 = vpop.permute.xlu0 %1104
  %1106 = vrot.lane.b32.xlu0 %v1095, 124
  %v1107 = vpop.permute.xlu0 %1106
  %1112 = vst.msk [vmem:[#allocation3 + $0x80] sm:$0xff] %vm204, %v1101
  %1113 = vst.msk [vmem:[#allocation3 + $0x88] sm:$0xff] %vm204, %v1103
  %1114 = vst.msk [vmem:[#allocation3 + $0x90] sm:$0xff] %vm204, %v1105
  %1115 = vst.msk [vmem:[#allocation3 + $0x98] sm:$0xff] %vm204, %v1107
  %v1116 = vld [vmem:[%s7] sm:$0xff]
  %v1117 = vld [vmem:[%s7 + $0x8] sm:$0xff]
  %v1118 = vld [vmem:[%s7 + $0x10] sm:$0xff]
  %v1119 = vld [vmem:[%s7 + $0x18] sm:$0xff]
  %v1120 = vld [vmem:[%s7 + $0x20] sm:$0xff]
  %v1121 = vld [vmem:[%s7 + $0x28] sm:$0xff]
  %v1122 = vld [vmem:[%s7 + $0x30] sm:$0xff]
  %v1123 = vld [vmem:[%s7 + $0x38] sm:$0xff]
  %v1124 = vld [vmem:[#allocation3] sm:$0xff]
  %v1125 = vld [vmem:[#allocation3 + $0x8] sm:$0xff]
  %v1126 = vld [vmem:[#allocation3 + $0x10] sm:$0xff]
  %v1127 = vld [vmem:[#allocation3 + $0x18] sm:$0xff]
  %v1128 = vld [vmem:[#allocation3 + $0x20] sm:$0xff]
  %v1129 = vld [vmem:[#allocation3 + $0x28] sm:$0xff]
  %v1130 = vld [vmem:[#allocation3 + $0x30] sm:$0xff]
  %v1131 = vld [vmem:[#allocation3 + $0x38] sm:$0xff]
  %v1132 = vld [vmem:[#allocation3 + $0x40] sm:$0xff]
  %v1133 = vld [vmem:[#allocation3 + $0x48] sm:$0xff]
  %v1134 = vld [vmem:[#allocation3 + $0x50] sm:$0xff]
  %v1135 = vld [vmem:[#allocation3 + $0x58] sm:$0xff]
  %v1136 = vld [vmem:[#allocation3 + $0x60] sm:$0xff]
  %v1137 = vld [vmem:[#allocation3 + $0x68] sm:$0xff]
  %v1138 = vld [vmem:[#allocation3 + $0x70] sm:$0xff]
  %v1139 = vld [vmem:[#allocation3 + $0x78] sm:$0xff]
  %v1140 = vld [vmem:[#allocation3 + $0x80] sm:$0xff]
  %v1141 = vld [vmem:[#allocation3 + $0x88] sm:$0xff]
  %v1142 = vld [vmem:[#allocation3 + $0x90] sm:$0xff]
  %v1143 = vld [vmem:[#allocation3 + $0x98] sm:$0xff]
  %v1144 = vld [vmem:[%s8] sm:$0xff]
  %v1145 = vld [vmem:[%s8 + $0x8] sm:$0xff]
  %v1146 = vld [vmem:[%s8 + $0x10] sm:$0xff]
  %v1147 = vld [vmem:[%s8 + $0x18] sm:$0xff]
  %1149 = vset.pattern.permute.xlu0 0
  %1150 = vperm.xlu0 %1149, %v1144
  %v1151 = vpop.permute.xlu0 %1150
  %1154 = vset.pattern.permute.xlu0 0
  %1155 = vperm.xlu0 %1154, %v1145
  %v1156 = vpop.permute.xlu0 %1155
  %1159 = vset.pattern.permute.xlu0 0
  %1160 = vperm.xlu0 %1159, %v1146
  %v1161 = vpop.permute.xlu0 %1160
  %1164 = vset.pattern.permute.xlu0 0
  %1165 = vperm.xlu0 %1164, %v1147
  %v1166 = vpop.permute.xlu0 %1165
  %v1169 = vsel %vm302, %v1117, 0
  %v1172 = vsel %vm302, %v1119, 0
  %v1175 = vsel %vm302, %v1121, 0
  %v1178 = vsel %vm302, %v1123, 0
  %1180 = vmatprep.subr.mxu0 0.0
  %1181 = vmatpush1.msra.mxu0 %v1139
  %1182 = vmatprep.subr.mxu0 0.0
  %1183 = vmatpush1.msra.mxu0 %v1138
  %1184 = vmatprep.subr.mxu0 0.0
  %1185 = vmatpush1.msra.mxu0 %v1137
  %1186 = vmatprep.subr.mxu0 0.0
  %1187 = vmatpush1.msra.mxu0 %v1136
  %1188 = vmatprep.subr.mxu0 0.0
  %1189 = vmatpush1.msra.mxu0 %v1135
  %1190 = vmatprep.subr.mxu0 0.0
  %1191 = vmatpush1.msra.mxu0 %v1134
  %1192 = vmatprep.subr.mxu0 0.0
  %1193 = vmatpush1.msra.mxu0 %v1133
  %1194 = vmatprep.subr.mxu0 0.0
  %1195 = vmatpush1.msra.mxu0 %v1132
  %1196 = vmatprep.subr.mxu0 0.0
  %1197 = vmatpush1.msra.mxu0 %v1131
  %1198 = vmatprep.subr.mxu0 0.0
  %1199 = vmatpush1.msra.mxu0 %v1130
  %1200 = vmatprep.subr.mxu0 0.0
  %1201 = vmatpush1.msra.mxu0 %v1129
  %1202 = vmatprep.subr.mxu0 0.0
  %1203 = vmatpush1.msra.mxu0 %v1128
  %1204 = vmatprep.subr.mxu0 0.0
  %1205 = vmatpush1.msra.mxu0 %v1127
  %1206 = vmatprep.subr.mxu0 0.0
  %1207 = vmatpush1.msra.mxu0 %v1126
  %1208 = vmatprep.subr.mxu0 0.0
  %1209 = vmatpush1.msra.mxu0 %v1125
  %1210 = vmatprep.subr.mxu0 0.0
  %1211 = vmatpush1.msra.mxu0 %v1124
  %1212 = vmatprep.subr.mxu0 0.0
  %1213 = vmatpush2.msra.mxu0 0.0
  %1214 = vmatprep.subr.mxu0 0.0
  %1215 = vmatpush2.msra.mxu0 0.0
  %1216 = vmatprep.subr.mxu0 0.0
  %1217 = vmatpush2.msra.mxu0 0.0
  %1218 = vmatprep.subr.mxu0 0.0
  %1219 = vmatpush2.msra.mxu0 0.0
  %1220 = vmatprep.subr.mxu0 0.0
  %1221 = vmatpush2.msra.mxu0 0.0
  %1222 = vmatprep.subr.mxu0 0.0
  %1223 = vmatpush2.msra.mxu0 0.0
  %1224 = vmatprep.subr.mxu0 0.0
  %1225 = vmatpush2.msra.mxu0 0.0
  %1226 = vmatprep.subr.mxu0 0.0
  %1227 = vmatpush2.msra.mxu0 0.0
  %1228 = vmatprep.subr.mxu0 0.0
  %1229 = vmatpush2.msra.mxu0 0.0
  %1230 = vmatprep.subr.mxu0 0.0
  %1231 = vmatpush2.msra.mxu0 0.0
  %1232 = vmatprep.subr.mxu0 0.0
  %1233 = vmatpush2.msra.mxu0 0.0
  %1234 = vmatprep.subr.mxu0 0.0
  %1235 = vmatpush2.msra.mxu0 0.0
  %1236 = vmatprep.subr.mxu0 0.0
  %1237 = vmatpush2.msra.mxu0 %v1143
  %1238 = vmatprep.subr.mxu0 0.0
  %1239 = vmatpush2.msra.mxu0 %v1142
  %1240 = vmatprep.subr.mxu0 0.0
  %1241 = vmatpush2.msra.mxu0 %v1141
  %1242 = vmatprep.subr.mxu0 0.0
  %1243 = vmatpush2.msra.mxu0 %v1140
  %1244 = vmatprep.mubr.f32.mxu0 %v1169
  %1245 = vmatmul.mubr.f32.gmra.mxu0 %v1116
  %v1246 = vpop.f32.mrf.mxu0
  %v1247 = vadd.f32 %v1151, %v1246
  %v1248 = vpop.f32.mrf.mxu0
  %1249 = vmatprep.mubr.f32.mxu0 %v1172
  %1250 = vmatmul.mubr.f32.gmra.mxu0 %v1118
  %v1251 = vpop.f32.mrf.mxu0
  %v1252 = vadd.f32 %v1156, %v1251
  %v1253 = vpop.f32.mrf.mxu0
  %1254 = vmatprep.mubr.f32.mxu0 %v1175
  %1255 = vmatmul.mubr.f32.gmra.mxu0 %v1120
  %v1256 = vpop.f32.mrf.mxu0
  %v1257 = vadd.f32 %v1161, %v1256
  %v1258 = vpop.f32.mrf.mxu0
  %1259 = vmatprep.mubr.f32.mxu0 %v1178
  %1260 = vmatmul.mubr.f32.gmra.mxu0 %v1122
  %v1261 = vpop.f32.mrf.mxu0
  %v1262 = vadd.f32 %v1166, %v1261
  %v1263 = vpop.f32.mrf.mxu0
  %1264 = vdwg.mxu0
  %v1265 = vld [vmem:[%s9] sm:$0xff]
  %v1266 = vld [vmem:[%s9 + $0x8] sm:$0xff]
  %v1267 = vld [vmem:[%s9 + $0x10] sm:$0xff]
  %v1268 = vld [vmem:[%s9 + $0x18] sm:$0xff]
  %v1269 = vld [vmem:[%s10] sm:$0xff]
  %v1270 = vld [vmem:[%s10 + $0x8] sm:$0xff]
  %v1271 = vld [vmem:[%s10 + $0x10] sm:$0xff]
  %v1272 = vld [vmem:[%s10 + $0x18] sm:$0xff]
  %v1274 = vsel %vm204, %v1247, 0
  %v1277 = vsel %vm204, %v1252, 0
  %v1280 = vsel %vm204, %v1257, 0
  %v1283 = vsel %vm204, %v1262, 0
  %1285 = vmatprep.subr.mxu0 0.0
  %1286 = vmatpush1.msra.mxu0 0.0
  %1287 = vmatprep.subr.mxu0 0.0
  %1288 = vmatpush1.msra.mxu0 0.0
  %1289 = vmatprep.subr.mxu0 0.0
  %1290 = vmatpush1.msra.mxu0 0.0
  %1291 = vmatprep.subr.mxu0 0.0
  %1292 = vmatpush1.msra.mxu0 0.0
  %1293 = vmatprep.subr.mxu0 0.0
  %1294 = vmatpush1.msra.mxu0 0.0
  %1295 = vmatprep.subr.mxu0 0.0
  %1296 = vmatpush1.msra.mxu0 0.0
  %1297 = vmatprep.subr.mxu0 0.0
  %1298 = vmatpush1.msra.mxu0 0.0
  %1299 = vmatprep.subr.mxu0 0.0
  %1300 = vmatpush1.msra.mxu0 0.0
  %1301 = vmatprep.subr.mxu0 0.0
  %1302 = vmatpush1.msra.mxu0 0.0
  %1303 = vmatprep.subr.mxu0 0.0
  %1304 = vmatpush1.msra.mxu0 0.0
  %1305 = vmatprep.subr.mxu0 0.0
  %1306 = vmatpush1.msra.mxu0 0.0
  %1307 = vmatprep.subr.mxu0 0.0
  %1308 = vmatpush1.msra.mxu0 0.0
  %1309 = vmatprep.subr.mxu0 0.0
  %1310 = vmatpush1.msra.mxu0 0.0
  %1311 = vmatprep.subr.mxu0 0.0
  %1312 = vmatpush1.msra.mxu0 0.0
  %1313 = vmatprep.subr.mxu0 0.0
  %1314 = vmatpush1.msra.mxu0 %v61
  %1315 = vmatprep.subr.mxu0 0.0
  %1316 = vmatpush1.msra.mxu0 %v60
  %1317 = vmatprep.subr.mxu0 0.0
  %1318 = vmatpush2.msra.mxu0 0.0
  %1319 = vmatprep.subr.mxu0 0.0
  %1320 = vmatpush2.msra.mxu0 0.0
  %1321 = vmatprep.subr.mxu0 0.0
  %1322 = vmatpush2.msra.mxu0 0.0
  %1323 = vmatprep.subr.mxu0 0.0
  %1324 = vmatpush2.msra.mxu0 0.0
  %1325 = vmatprep.subr.mxu0 0.0
  %1326 = vmatpush2.msra.mxu0 0.0
  %1327 = vmatprep.subr.mxu0 0.0
  %1328 = vmatpush2.msra.mxu0 0.0
  %1329 = vmatprep.subr.mxu0 0.0
  %1330 = vmatpush2.msra.mxu0 0.0
  %1331 = vmatprep.subr.mxu0 0.0
  %1332 = vmatpush2.msra.mxu0 0.0
  %1333 = vmatprep.subr.mxu0 0.0
  %1334 = vmatpush2.msra.mxu0 0.0
  %1335 = vmatprep.subr.mxu0 0.0
  %1336 = vmatpush2.msra.mxu0 0.0
  %1337 = vmatprep.subr.mxu0 0.0
  %1338 = vmatpush2.msra.mxu0 0.0
  %1339 = vmatprep.subr.mxu0 0.0
  %1340 = vmatpush2.msra.mxu0 0.0
  %1341 = vmatprep.subr.mxu0 0.0
  %1342 = vmatpush2.msra.mxu0 0.0
  %1343 = vmatprep.subr.mxu0 0.0
  %1344 = vmatpush2.msra.mxu0 0.0
  %1345 = vmatprep.subr.mxu0 0.0
  %1346 = vmatpush2.msra.mxu0 0.0
  %1347 = vmatprep.subr.mxu0 0.0
  %1348 = vmatpush2.msra.mxu0 0.0
  %1349 = vmatprep.mubr.f32.mxu0 0.0
  %1350 = vmatmul.mubr.f32.gmra.mxu0 %v1274
  %v1351 = vpop.f32.mrf.mxu0
  %v1352 = vadd.f32 0.0, %v1351
  %v1353 = vpop.f32.mrf.mxu0
  %1354 = vmatprep.mubr.f32.mxu0 0.0
  %1355 = vmatmul.mubr.f32.gmra.mxu0 %v1277
  %v1356 = vpop.f32.mrf.mxu0
  %v1357 = vadd.f32 0.0, %v1356
  %v1358 = vpop.f32.mrf.mxu0
  %1359 = vmatprep.mubr.f32.mxu0 0.0
  %1360 = vmatmul.mubr.f32.gmra.mxu0 %v1280
  %v1361 = vpop.f32.mrf.mxu0
  %v1362 = vadd.f32 0.0, %v1361
  %v1363 = vpop.f32.mrf.mxu0
  %1364 = vmatprep.mubr.f32.mxu0 0.0
  %1365 = vmatmul.mubr.f32.gmra.mxu0 %v1283
  %v1366 = vpop.f32.mrf.mxu0
  %v1367 = vadd.f32 0.0, %v1366
  %v1368 = vpop.f32.mrf.mxu0
  %1369 = vdwg.mxu0
  %1370 = vmatprep.subr.mxu0 0.0
  %1371 = vmatpush1.msra.mxu0 0.0
  %1372 = vmatprep.subr.mxu0 0.0
  %1373 = vmatpush1.msra.mxu0 0.0
  %1374 = vmatprep.subr.mxu0 0.0
  %1375 = vmatpush1.msra.mxu0 0.0
  %1376 = vmatprep.subr.mxu0 0.0
  %1377 = vmatpush1.msra.mxu0 0.0
  %1378 = vmatprep.subr.mxu0 0.0
  %1379 = vmatpush1.msra.mxu0 0.0
  %1380 = vmatprep.subr.mxu0 0.0
  %1381 = vmatpush1.msra.mxu0 0.0
  %1382 = vmatprep.subr.mxu0 0.0
  %1383 = vmatpush1.msra.mxu0 0.0
  %1384 = vmatprep.subr.mxu0 0.0
  %1385 = vmatpush1.msra.mxu0 0.0
  %1386 = vmatprep.subr.mxu0 0.0
  %1387 = vmatpush1.msra.mxu0 0.0
  %1388 = vmatprep.subr.mxu0 0.0
  %1389 = vmatpush1.msra.mxu0 0.0
  %1390 = vmatprep.subr.mxu0 0.0
  %1391 = vmatpush1.msra.mxu0 0.0
  %1392 = vmatprep.subr.mxu0 0.0
  %1393 = vmatpush1.msra.mxu0 0.0
  %1394 = vmatprep.subr.mxu0 0.0
  %1395 = vmatpush1.msra.mxu0 %v1367
  %1396 = vmatprep.subr.mxu0 0.0
  %1397 = vmatpush1.msra.mxu0 %v1362
  %1398 = vmatprep.subr.mxu0 0.0
  %1399 = vmatpush1.msra.mxu0 %v1357
  %1400 = vmatprep.subr.mxu0 0.0
  %1401 = vmatpush1.msra.mxu0 %v1352
  %1402 = vmatprep.subr.mxu0 0.0
  %1403 = vmatpush2.msra.mxu0 0.0
  %1404 = vmatprep.subr.mxu0 0.0
  %1405 = vmatpush2.msra.mxu0 0.0
  %1406 = vmatprep.subr.mxu0 0.0
  %1407 = vmatpush2.msra.mxu0 0.0
  %1408 = vmatprep.subr.mxu0 0.0
  %1409 = vmatpush2.msra.mxu0 0.0
  %1410 = vmatprep.subr.mxu0 0.0
  %1411 = vmatpush2.msra.mxu0 0.0
  %1412 = vmatprep.subr.mxu0 0.0
  %1413 = vmatpush2.msra.mxu0 0.0
  %1414 = vmatprep.subr.mxu0 0.0
  %1415 = vmatpush2.msra.mxu0 0.0
  %1416 = vmatprep.subr.mxu0 0.0
  %1417 = vmatpush2.msra.mxu0 0.0
  %1418 = vmatprep.subr.mxu0 0.0
  %1419 = vmatpush2.msra.mxu0 0.0
  %1420 = vmatprep.subr.mxu0 0.0
  %1421 = vmatpush2.msra.mxu0 0.0
  %1422 = vmatprep.subr.mxu0 0.0
  %1423 = vmatpush2.msra.mxu0 0.0
  %1424 = vmatprep.subr.mxu0 0.0
  %1425 = vmatpush2.msra.mxu0 0.0
  %1426 = vmatprep.subr.mxu0 0.0
  %1427 = vmatpush2.msra.mxu0 0.0
  %1428 = vmatprep.subr.mxu0 0.0
  %1429 = vmatpush2.msra.mxu0 0.0
  %1430 = vmatprep.subr.mxu0 0.0
  %1431 = vmatpush2.msra.mxu0 0.0
  %1432 = vmatprep.subr.mxu0 0.0
  %1433 = vmatpush2.msra.mxu0 0.0
  %1434 = vmatprep.mubr.f32.mxu0 0.0
  %1435 = vmatmul.mubr.f32.gmra.mxu0 %v304
  %v1436 = vpop.f32.mrf.mxu0
  %v1437 = vadd.f32 0.0, %v1436
  %v1438 = vpop.f32.mrf.mxu0
  %1439 = vmatprep.mubr.f32.mxu0 0.0
  %1440 = vmatmul.mubr.f32.gmra.mxu0 %v307
  %v1441 = vpop.f32.mrf.mxu0
  %v1442 = vadd.f32 0.0, %v1441
  %v1443 = vpop.f32.mrf.mxu0
  %1444 = vmatprep.mubr.f32.mxu0 0.0
  %1445 = vmatmul.mubr.f32.gmra.mxu0 %v310
  %v1446 = vpop.f32.mrf.mxu0
  %v1447 = vadd.f32 0.0, %v1446
  %v1448 = vpop.f32.mrf.mxu0
  %1449 = vmatprep.mubr.f32.mxu0 0.0
  %1450 = vmatmul.mubr.f32.gmra.mxu0 %v313
  %v1451 = vpop.f32.mrf.mxu0
  %v1452 = vadd.f32 0.0, %v1451
  %v1453 = vpop.f32.mrf.mxu0
  %1454 = vdwg.mxu0
  %v1455 = vmul.f32 %v1437, 0.03125
  %v1456 = vmul.f32 %v1442, 0.03125
  %v1457 = vmul.f32 %v1447, 0.03125
  %v1458 = vmul.f32 %v1452, 0.03125
  %v1460 = vsel %vm404, %v1455, 0
  %v1463 = vsel %vm404, %v1456, 0
  %v1466 = vsel %vm404, %v1457, 0
  %v1469 = vsel %vm404, %v1458, 0
  %1471 = vmatprep.subr.mxu0 0.0
  %1472 = vmatpush1.msra.mxu0 0.0
  %1473 = vmatprep.subr.mxu0 0.0
  %1474 = vmatpush1.msra.mxu0 0.0
  %1475 = vmatprep.subr.mxu0 0.0
  %1476 = vmatpush1.msra.mxu0 0.0
  %1477 = vmatprep.subr.mxu0 0.0
  %1478 = vmatpush1.msra.mxu0 0.0
  %1479 = vmatprep.subr.mxu0 0.0
  %1480 = vmatpush1.msra.mxu0 0.0
  %1481 = vmatprep.subr.mxu0 0.0
  %1482 = vmatpush1.msra.mxu0 0.0
  %1483 = vmatprep.subr.mxu0 0.0
  %1484 = vmatpush1.msra.mxu0 0.0
  %1485 = vmatprep.subr.mxu0 0.0
  %1486 = vmatpush1.msra.mxu0 0.0
  %1487 = vmatprep.subr.mxu0 0.0
  %1488 = vmatpush1.msra.mxu0 0.0
  %1489 = vmatprep.subr.mxu0 0.0
  %1490 = vmatpush1.msra.mxu0 0.0
  %1491 = vmatprep.subr.mxu0 0.0
  %1492 = vmatpush1.msra.mxu0 0.0
  %1493 = vmatprep.subr.mxu0 0.0
  %1494 = vmatpush1.msra.mxu0 0.0
  %1495 = vmatprep.subr.mxu0 0.0
  %1496 = vmatpush1.msra.mxu0 0.0
  %1497 = vmatprep.subr.mxu0 0.0
  %1498 = vmatpush1.msra.mxu0 0.0
  %1499 = vmatprep.subr.mxu0 0.0
  %1500 = vmatpush1.msra.mxu0 0.0
  %1501 = vmatprep.subr.mxu0 0.0
  %1502 = vmatpush1.msra.mxu0 %v419
  %1503 = vmatprep.subr.mxu0 0.0
  %1504 = vmatpush2.msra.mxu0 0.0
  %1505 = vmatprep.subr.mxu0 0.0
  %1506 = vmatpush2.msra.mxu0 0.0
  %1507 = vmatprep.subr.mxu0 0.0
  %1508 = vmatpush2.msra.mxu0 0.0
  %1509 = vmatprep.subr.mxu0 0.0
  %1510 = vmatpush2.msra.mxu0 0.0
  %1511 = vmatprep.subr.mxu0 0.0
  %1512 = vmatpush2.msra.mxu0 0.0
  %1513 = vmatprep.subr.mxu0 0.0
  %1514 = vmatpush2.msra.mxu0 0.0
  %1515 = vmatprep.subr.mxu0 0.0
  %1516 = vmatpush2.msra.mxu0 0.0
  %1517 = vmatprep.subr.mxu0 0.0
  %1518 = vmatpush2.msra.mxu0 0.0
  %1519 = vmatprep.subr.mxu0 0.0
  %1520 = vmatpush2.msra.mxu0 0.0
  %1521 = vmatprep.subr.mxu0 0.0
  %1522 = vmatpush2.msra.mxu0 0.0
  %1523 = vmatprep.subr.mxu0 0.0
  %1524 = vmatpush2.msra.mxu0 0.0
  %1525 = vmatprep.subr.mxu0 0.0
  %1526 = vmatpush2.msra.mxu0 0.0
  %1527 = vmatprep.subr.mxu0 0.0
  %1528 = vmatpush2.msra.mxu0 0.0
  %1529 = vmatprep.subr.mxu0 0.0
  %1530 = vmatpush2.msra.mxu0 0.0
  %1531 = vmatprep.subr.mxu0 0.0
  %1532 = vmatpush2.msra.mxu0 0.0
  %1533 = vmatprep.subr.mxu0 0.0
  %1534 = vmatpush2.msra.mxu0 0.0
  %1535 = vmatprep.mubr.f32.mxu0 0.0
  %1536 = vmatmul.mubr.f32.gmra.mxu0 %v1460
  %v1537 = vpop.f32.mrf.mxu0
  %v1538 = vadd.f32 0.0, %v1537
  %v1539 = vpop.f32.mrf.mxu0
  %1540 = vmatprep.mubr.f32.mxu0 0.0
  %1541 = vmatmul.mubr.f32.gmra.mxu0 %v1463
  %v1542 = vpop.f32.mrf.mxu0
  %v1543 = vadd.f32 0.0, %v1542
  %v1544 = vpop.f32.mrf.mxu0
  %1545 = vmatprep.mubr.f32.mxu0 0.0
  %1546 = vmatmul.mubr.f32.gmra.mxu0 %v1466
  %v1547 = vpop.f32.mrf.mxu0
  %v1548 = vadd.f32 0.0, %v1547
  %v1549 = vpop.f32.mrf.mxu0
  %1550 = vmatprep.mubr.f32.mxu0 0.0
  %1551 = vmatmul.mubr.f32.gmra.mxu0 %v1469
  %v1552 = vpop.f32.mrf.mxu0
  %v1553 = vadd.f32 0.0, %v1552
  %v1554 = vpop.f32.mrf.mxu0
  %1555 = vdwg.mxu0
  %v1556 = vsub.f32 %v1247, %v1538
  %v1557 = vsub.f32 %v1252, %v1543
  %v1558 = vsub.f32 %v1257, %v1548
  %v1559 = vsub.f32 %v1262, %v1553
  %v1560 = vmul.f32 %v1556, %v1556
  %v1561 = vmul.f32 %v1557, %v1557
  %v1562 = vmul.f32 %v1558, %v1558
  %v1563 = vmul.f32 %v1559, %v1559
  %v1565 = vsel %vm204, %v1560, 0
  %v1568 = vsel %vm204, %v1561, 0
  %v1571 = vsel %vm204, %v1562, 0
  %v1574 = vsel %vm204, %v1563, 0
  %1576 = vmatprep.subr.mxu0 0.0
  %1577 = vmatpush1.msra.mxu0 0.0
  %1578 = vmatprep.subr.mxu0 0.0
  %1579 = vmatpush1.msra.mxu0 0.0
  %1580 = vmatprep.subr.mxu0 0.0
  %1581 = vmatpush1.msra.mxu0 0.0
  %1582 = vmatprep.subr.mxu0 0.0
  %1583 = vmatpush1.msra.mxu0 0.0
  %1584 = vmatprep.subr.mxu0 0.0
  %1585 = vmatpush1.msra.mxu0 0.0
  %1586 = vmatprep.subr.mxu0 0.0
  %1587 = vmatpush1.msra.mxu0 0.0
  %1588 = vmatprep.subr.mxu0 0.0
  %1589 = vmatpush1.msra.mxu0 0.0
  %1590 = vmatprep.subr.mxu0 0.0
  %1591 = vmatpush1.msra.mxu0 0.0
  %1592 = vmatprep.subr.mxu0 0.0
  %1593 = vmatpush1.msra.mxu0 0.0
  %1594 = vmatprep.subr.mxu0 0.0
  %1595 = vmatpush1.msra.mxu0 0.0
  %1596 = vmatprep.subr.mxu0 0.0
  %1597 = vmatpush1.msra.mxu0 0.0
  %1598 = vmatprep.subr.mxu0 0.0
  %1599 = vmatpush1.msra.mxu0 0.0
  %1600 = vmatprep.subr.mxu0 0.0
  %1601 = vmatpush1.msra.mxu0 0.0
  %1602 = vmatprep.subr.mxu0 0.0
  %1603 = vmatpush1.msra.mxu0 0.0
  %1604 = vmatprep.subr.mxu0 0.0
  %1605 = vmatpush1.msra.mxu0 %v61
  %1606 = vmatprep.subr.mxu0 0.0
  %1607 = vmatpush1.msra.mxu0 %v60
  %1608 = vmatprep.subr.mxu0 0.0
  %1609 = vmatpush2.msra.mxu0 0.0
  %1610 = vmatprep.subr.mxu0 0.0
  %1611 = vmatpush2.msra.mxu0 0.0
  %1612 = vmatprep.subr.mxu0 0.0
  %1613 = vmatpush2.msra.mxu0 0.0
  %1614 = vmatprep.subr.mxu0 0.0
  %1615 = vmatpush2.msra.mxu0 0.0
  %1616 = vmatprep.subr.mxu0 0.0
  %1617 = vmatpush2.msra.mxu0 0.0
  %1618 = vmatprep.subr.mxu0 0.0
  %1619 = vmatpush2.msra.mxu0 0.0
  %1620 = vmatprep.subr.mxu0 0.0
  %1621 = vmatpush2.msra.mxu0 0.0
  %1622 = vmatprep.subr.mxu0 0.0
  %1623 = vmatpush2.msra.mxu0 0.0
  %1624 = vmatprep.subr.mxu0 0.0
  %1625 = vmatpush2.msra.mxu0 0.0
  %1626 = vmatprep.subr.mxu0 0.0
  %1627 = vmatpush2.msra.mxu0 0.0
  %1628 = vmatprep.subr.mxu0 0.0
  %1629 = vmatpush2.msra.mxu0 0.0
  %1630 = vmatprep.subr.mxu0 0.0
  %1631 = vmatpush2.msra.mxu0 0.0
  %1632 = vmatprep.subr.mxu0 0.0
  %1633 = vmatpush2.msra.mxu0 0.0
  %1634 = vmatprep.subr.mxu0 0.0
  %1635 = vmatpush2.msra.mxu0 0.0
  %1636 = vmatprep.subr.mxu0 0.0
  %1637 = vmatpush2.msra.mxu0 0.0
  %1638 = vmatprep.subr.mxu0 0.0
  %1639 = vmatpush2.msra.mxu0 0.0
  %1640 = vmatprep.mubr.f32.mxu0 0.0
  %1641 = vmatmul.mubr.f32.gmra.mxu0 %v1565
  %v1642 = vpop.f32.mrf.mxu0
  %v1643 = vadd.f32 0.0, %v1642
  %v1644 = vpop.f32.mrf.mxu0
  %1645 = vmatprep.mubr.f32.mxu0 0.0
  %1646 = vmatmul.mubr.f32.gmra.mxu0 %v1568
  %v1647 = vpop.f32.mrf.mxu0
  %v1648 = vadd.f32 0.0, %v1647
  %v1649 = vpop.f32.mrf.mxu0
  %1650 = vmatprep.mubr.f32.mxu0 0.0
  %1651 = vmatmul.mubr.f32.gmra.mxu0 %v1571
  %v1652 = vpop.f32.mrf.mxu0
  %v1653 = vadd.f32 0.0, %v1652
  %v1654 = vpop.f32.mrf.mxu0
  %1655 = vmatprep.mubr.f32.mxu0 0.0
  %1656 = vmatmul.mubr.f32.gmra.mxu0 %v1574
  %v1657 = vpop.f32.mrf.mxu0
  %v1658 = vadd.f32 0.0, %v1657
  %v1659 = vpop.f32.mrf.mxu0
  %1660 = vdwg.mxu0
  %1661 = vmatprep.subr.mxu0 0.0
  %1662 = vmatpush1.msra.mxu0 0.0
  %1663 = vmatprep.subr.mxu0 0.0
  %1664 = vmatpush1.msra.mxu0 0.0
  %1665 = vmatprep.subr.mxu0 0.0
  %1666 = vmatpush1.msra.mxu0 0.0
  %1667 = vmatprep.subr.mxu0 0.0
  %1668 = vmatpush1.msra.mxu0 0.0
  %1669 = vmatprep.subr.mxu0 0.0
  %1670 = vmatpush1.msra.mxu0 0.0
  %1671 = vmatprep.subr.mxu0 0.0
  %1672 = vmatpush1.msra.mxu0 0.0
  %1673 = vmatprep.subr.mxu0 0.0
  %1674 = vmatpush1.msra.mxu0 0.0
  %1675 = vmatprep.subr.mxu0 0.0
  %1676 = vmatpush1.msra.mxu0 0.0
  %1677 = vmatprep.subr.mxu0 0.0
  %1678 = vmatpush1.msra.mxu0 0.0
  %1679 = vmatprep.subr.mxu0 0.0
  %1680 = vmatpush1.msra.mxu0 0.0
  %1681 = vmatprep.subr.mxu0 0.0
  %1682 = vmatpush1.msra.mxu0 0.0
  %1683 = vmatprep.subr.mxu0 0.0
  %1684 = vmatpush1.msra.mxu0 0.0
  %1685 = vmatprep.subr.mxu0 0.0
  %1686 = vmatpush1.msra.mxu0 %v1658
  %1687 = vmatprep.subr.mxu0 0.0
  %1688 = vmatpush1.msra.mxu0 %v1653
  %1689 = vmatprep.subr.mxu0 0.0
  %1690 = vmatpush1.msra.mxu0 %v1648
  %1691 = vmatprep.subr.mxu0 0.0
  %1692 = vmatpush1.msra.mxu0 %v1643
  %1693 = vmatprep.subr.mxu0 0.0
  %1694 = vmatpush2.msra.mxu0 0.0
  %1695 = vmatprep.subr.mxu0 0.0
  %1696 = vmatpush2.msra.mxu0 0.0
  %1697 = vmatprep.subr.mxu0 0.0
  %1698 = vmatpush2.msra.mxu0 0.0
  %1699 = vmatprep.subr.mxu0 0.0
  %1700 = vmatpush2.msra.mxu0 0.0
  %1701 = vmatprep.subr.mxu0 0.0
  %1702 = vmatpush2.msra.mxu0 0.0
  %1703 = vmatprep.subr.mxu0 0.0
  %1704 = vmatpush2.msra.mxu0 0.0
  %1705 = vmatprep.subr.mxu0 0.0
  %1706 = vmatpush2.msra.mxu0 0.0
  %1707 = vmatprep.subr.mxu0 0.0
  %1708 = vmatpush2.msra.mxu0 0.0
  %1709 = vmatprep.subr.mxu0 0.0
  %1710 = vmatpush2.msra.mxu0 0.0
  %1711 = vmatprep.subr.mxu0 0.0
  %1712 = vmatpush2.msra.mxu0 0.0
  %1713 = vmatprep.subr.mxu0 0.0
  %1714 = vmatpush2.msra.mxu0 0.0
  %1715 = vmatprep.subr.mxu0 0.0
  %1716 = vmatpush2.msra.mxu0 0.0
  %1717 = vmatprep.subr.mxu0 0.0
  %1718 = vmatpush2.msra.mxu0 0.0
  %1719 = vmatprep.subr.mxu0 0.0
  %1720 = vmatpush2.msra.mxu0 0.0
  %1721 = vmatprep.subr.mxu0 0.0
  %1722 = vmatpush2.msra.mxu0 0.0
  %1723 = vmatprep.subr.mxu0 0.0
  %1724 = vmatpush2.msra.mxu0 0.0
  %1725 = vmatprep.mubr.f32.mxu0 0.0
  %1726 = vmatmul.mubr.f32.gmra.mxu0 %v304
  %v1727 = vpop.f32.mrf.mxu0
  %v1728 = vadd.f32 0.0, %v1727
  %v1729 = vpop.f32.mrf.mxu0
  %1730 = vmatprep.mubr.f32.mxu0 0.0
  %1731 = vmatmul.mubr.f32.gmra.mxu0 %v307
  %v1732 = vpop.f32.mrf.mxu0
  %v1733 = vadd.f32 0.0, %v1732
  %v1734 = vpop.f32.mrf.mxu0
  %1735 = vmatprep.mubr.f32.mxu0 0.0
  %1736 = vmatmul.mubr.f32.gmra.mxu0 %v310
  %v1737 = vpop.f32.mrf.mxu0
  %v1738 = vadd.f32 0.0, %v1737
  %v1739 = vpop.f32.mrf.mxu0
  %1740 = vmatprep.mubr.f32.mxu0 0.0
  %1741 = vmatmul.mubr.f32.gmra.mxu0 %v313
  %v1742 = vpop.f32.mrf.mxu0
  %v1743 = vadd.f32 0.0, %v1742
  %v1744 = vpop.f32.mrf.mxu0
  %1745 = vdwg.mxu0
  %v1746 = vmul.f32 %v1728, 0.03125
  %v1747 = vmul.f32 %v1733, 0.03125
  %v1748 = vmul.f32 %v1738, 0.03125
  %v1749 = vmul.f32 %v1743, 0.03125
  %v1750 = vadd.f32 %v1746, 1e-05
  %v1751 = vadd.f32 %v1747, 1e-05
  %v1752 = vadd.f32 %v1748, 1e-05
  %v1753 = vadd.f32 %v1749, 1e-05
  %v1754 = vrsqrt.pop %v1750
  %v1755 = vrsqrt.pop %v1751
  %v1756 = vrsqrt.pop %v1752
  %v1757 = vrsqrt.pop %v1753
  %v1759 = vsel %vm404, %v1754, 0
  %v1762 = vsel %vm404, %v1755, 0
  %v1765 = vsel %vm404, %v1756, 0
  %v1768 = vsel %vm404, %v1757, 0
  %1770 = vmatprep.subr.mxu0 0.0
  %1771 = vmatpush1.msra.mxu0 0.0
  %1772 = vmatprep.subr.mxu0 0.0
  %1773 = vmatpush1.msra.mxu0 0.0
  %1774 = vmatprep.subr.mxu0 0.0
  %1775 = vmatpush1.msra.mxu0 0.0
  %1776 = vmatprep.subr.mxu0 0.0
  %1777 = vmatpush1.msra.mxu0 0.0
  %1778 = vmatprep.subr.mxu0 0.0
  %1779 = vmatpush1.msra.mxu0 0.0
  %1780 = vmatprep.subr.mxu0 0.0
  %1781 = vmatpush1.msra.mxu0 0.0
  %1782 = vmatprep.subr.mxu0 0.0
  %1783 = vmatpush1.msra.mxu0 0.0
  %1784 = vmatprep.subr.mxu0 0.0
  %1785 = vmatpush1.msra.mxu0 0.0
  %1786 = vmatprep.subr.mxu0 0.0
  %1787 = vmatpush1.msra.mxu0 0.0
  %1788 = vmatprep.subr.mxu0 0.0
  %1789 = vmatpush1.msra.mxu0 0.0
  %1790 = vmatprep.subr.mxu0 0.0
  %1791 = vmatpush1.msra.mxu0 0.0
  %1792 = vmatprep.subr.mxu0 0.0
  %1793 = vmatpush1.msra.mxu0 0.0
  %1794 = vmatprep.subr.mxu0 0.0
  %1795 = vmatpush1.msra.mxu0 0.0
  %1796 = vmatprep.subr.mxu0 0.0
  %1797 = vmatpush1.msra.mxu0 0.0
  %1798 = vmatprep.subr.mxu0 0.0
  %1799 = vmatpush1.msra.mxu0 0.0
  %1800 = vmatprep.subr.mxu0 0.0
  %1801 = vmatpush1.msra.mxu0 %v419
  %1802 = vmatprep.subr.mxu0 0.0
  %1803 = vmatpush2.msra.mxu0 0.0
  %1804 = vmatprep.subr.mxu0 0.0
  %1805 = vmatpush2.msra.mxu0 0.0
  %1806 = vmatprep.subr.mxu0 0.0
  %1807 = vmatpush2.msra.mxu0 0.0
  %1808 = vmatprep.subr.mxu0 0.0
  %1809 = vmatpush2.msra.mxu0 0.0
  %1810 = vmatprep.subr.mxu0 0.0
  %1811 = vmatpush2.msra.mxu0 0.0
  %1812 = vmatprep.subr.mxu0 0.0
  %1813 = vmatpush2.msra.mxu0 0.0
  %1814 = vmatprep.subr.mxu0 0.0
  %1815 = vmatpush2.msra.mxu0 0.0
  %1816 = vmatprep.subr.mxu0 0.0
  %1817 = vmatpush2.msra.mxu0 0.0
  %1818 = vmatprep.subr.mxu0 0.0
  %1819 = vmatpush2.msra.mxu0 0.0
  %1820 = vmatprep.subr.mxu0 0.0
  %1821 = vmatpush2.msra.mxu0 0.0
  %1822 = vmatprep.subr.mxu0 0.0
  %1823 = vmatpush2.msra.mxu0 0.0
  %1824 = vmatprep.subr.mxu0 0.0
  %1825 = vmatpush2.msra.mxu0 0.0
  %1826 = vmatprep.subr.mxu0 0.0
  %1827 = vmatpush2.msra.mxu0 0.0
  %1828 = vmatprep.subr.mxu0 0.0
  %1829 = vmatpush2.msra.mxu0 0.0
  %1830 = vmatprep.subr.mxu0 0.0
  %1831 = vmatpush2.msra.mxu0 0.0
  %1832 = vmatprep.subr.mxu0 0.0
  %1833 = vmatpush2.msra.mxu0 0.0
  %1834 = vmatprep.mubr.f32.mxu0 0.0
  %1835 = vmatmul.mubr.f32.gmra.mxu0 %v1759
  %v1836 = vpop.f32.mrf.mxu0
  %v1837 = vadd.f32 0.0, %v1836
  %v1838 = vpop.f32.mrf.mxu0
  %1839 = vmatprep.mubr.f32.mxu0 0.0
  %1840 = vmatmul.mubr.f32.gmra.mxu0 %v1762
  %v1841 = vpop.f32.mrf.mxu0
  %v1842 = vadd.f32 0.0, %v1841
  %v1843 = vpop.f32.mrf.mxu0
  %1844 = vmatprep.mubr.f32.mxu0 0.0
  %1845 = vmatmul.mubr.f32.gmra.mxu0 %v1765
  %v1846 = vpop.f32.mrf.mxu0
  %v1847 = vadd.f32 0.0, %v1846
  %v1848 = vpop.f32.mrf.mxu0
  %1849 = vmatprep.mubr.f32.mxu0 0.0
  %1850 = vmatmul.mubr.f32.gmra.mxu0 %v1768
  %v1851 = vpop.f32.mrf.mxu0
  %v1852 = vadd.f32 0.0, %v1851
  %v1853 = vpop.f32.mrf.mxu0
  %1854 = vdwg.mxu0
  %v1855 = vmul.f32 %v1556, %v1837
  %v1856 = vmul.f32 %v1557, %v1842
  %v1857 = vmul.f32 %v1558, %v1847
  %v1858 = vmul.f32 %v1559, %v1852
  %1860 = vset.pattern.permute.xlu0 0
  %1861 = vperm.xlu0 %1860, %v1265
  %v1862 = vpop.permute.xlu0 %1861
  %1865 = vset.pattern.permute.xlu0 0
  %1866 = vperm.xlu0 %1865, %v1266
  %v1867 = vpop.permute.xlu0 %1866
  %1870 = vset.pattern.permute.xlu0 0
  %1871 = vperm.xlu0 %1870, %v1267
  %v1872 = vpop.permute.xlu0 %1871
  %1875 = vset.pattern.permute.xlu0 0
  %1876 = vperm.xlu0 %1875, %v1268
  %v1877 = vpop.permute.xlu0 %1876
  %v1879 = vmul.f32 %v1855, %v1862
  %v1880 = vmul.f32 %v1856, %v1867
  %v1881 = vmul.f32 %v1857, %v1872
  %v1882 = vmul.f32 %v1858, %v1877
  %1884 = vset.pattern.permute.xlu0 0
  %1885 = vperm.xlu0 %1884, %v1269
  %v1886 = vpop.permute.xlu0 %1885
  %1889 = vset.pattern.permute.xlu0 0
  %1890 = vperm.xlu0 %1889, %v1270
  %v1891 = vpop.permute.xlu0 %1890
  %1894 = vset.pattern.permute.xlu0 0
  %1895 = vperm.xlu0 %1894, %v1271
  %v1896 = vpop.permute.xlu0 %1895
  %1899 = vset.pattern.permute.xlu0 0
  %1900 = vperm.xlu0 %1899, %v1272
  %v1901 = vpop.permute.xlu0 %1900
  %v1903 = vadd.f32 %v1879, %v1886
  %v1904 = vadd.f32 %v1880, %v1891
  %v1905 = vadd.f32 %v1881, %v1896
  %v1906 = vadd.f32 %v1882, %v1901
  %v1907 = vmax.f32 %v1903, 0.0
  %v1908 = vmax.f32 %v1904, 0.0
  %v1909 = vmax.f32 %v1905, 0.0
  %v1910 = vmax.f32 %v1906, 0.0
  %vm1911 = vcmp.ne.f32.partialorder %v1903, %v1903
  %vm1912 = vcmp.ne.f32.partialorder %v1904, %v1904
  %vm1913 = vcmp.ne.f32.partialorder %v1905, %v1905
  %vm1914 = vcmp.ne.f32.partialorder %v1906, %v1906
  %v1915 = vadd.f32 %v1903, 0.0
  %v1916 = vadd.f32 %v1904, 0.0
  %v1917 = vadd.f32 %v1905, 0.0
  %v1918 = vadd.f32 %v1906, 0.0
  %v1919 = vand.u32 2147483647, %v1903
  %v1920 = vand.u32 2147483647, %v1904
  %v1921 = vand.u32 2147483647, %v1905
  %v1922 = vand.u32 2147483647, %v1906
  %v1923 = vsub.f32 0.0, %v1919
  %v1924 = vsub.f32 0.0, %v1920
  %v1925 = vsub.f32 0.0, %v1921
  %v1926 = vsub.f32 0.0, %v1922
  %v1927 = vmul.f32 %v1923, 1.442695
  %v1928 = vpow.pop %v1927
  %v1929 = vmul.f32 %v1924, 1.442695
  %v1930 = vpow.pop %v1929
  %v1931 = vmul.f32 %v1925, 1.442695
  %v1932 = vpow.pop %v1931
  %v1933 = vmul.f32 %v1926, 1.442695
  %v1934 = vpow.pop %v1933
  %v1935 = vadd.f32 %v1928, 1.0
  %v1936 = vlog2.pop %v1935
  %v1937 = vmul.f32 %v1936, 0.6931472
  %v1938 = vmul.f32 -0.5, %v1928
  %v1939 = vadd.f32 %v1938, 1.0
  %v1940 = vmul.f32 %v1939, %v1928
  %v1941 = vand.u32 2147483647, %v1928
  %vm1942 = vcmp.lt.f32.partialorder %v1941, 0.0004427343
  %v1943 = vsel %vm1942, %v1940, %v1937
  %v1944 = vadd.f32 %v1930, 1.0
  %v1945 = vlog2.pop %v1944
  %v1946 = vmul.f32 %v1945, 0.6931472
  %v1947 = vmul.f32 -0.5, %v1930
  %v1948 = vadd.f32 %v1947, 1.0
  %v1949 = vmul.f32 %v1948, %v1930
  %v1950 = vand.u32 2147483647, %v1930
  %vm1951 = vcmp.lt.f32.partialorder %v1950, 0.0004427343
  %v1952 = vsel %vm1951, %v1949, %v1946
  %v1953 = vadd.f32 %v1932, 1.0
  %v1954 = vlog2.pop %v1953
  %v1955 = vmul.f32 %v1954, 0.6931472
  %v1956 = vmul.f32 -0.5, %v1932
  %v1957 = vadd.f32 %v1956, 1.0
  %v1958 = vmul.f32 %v1957, %v1932
  %v1959 = vand.u32 2147483647, %v1932
  %vm1960 = vcmp.lt.f32.partialorder %v1959, 0.0004427343
  %v1961 = vsel %vm1960, %v1958, %v1955
  %v1962 = vadd.f32 %v1934, 1.0
  %v1963 = vlog2.pop %v1962
  %v1964 = vmul.f32 %v1963, 0.6931472
  %v1965 = vmul.f32 -0.5, %v1934
  %v1966 = vadd.f32 %v1965, 1.0
  %v1967 = vmul.f32 %v1966, %v1934
  %v1968 = vand.u32 2147483647, %v1934
  %vm1969 = vcmp.lt.f32.partialorder %v1968, 0.0004427343
  %v1970 = vsel %vm1969, %v1967, %v1964
  %v1971 = vadd.f32 %v1907, %v1943
  %v1972 = vadd.f32 %v1908, %v1952
  %v1973 = vadd.f32 %v1909, %v1961
  %v1974 = vadd.f32 %v1910, %v1970
  %v1975 = vsel %vm1911, %v1915, %v1971
  %v1976 = vsel %vm1912, %v1916, %v1972
  %v1977 = vsel %vm1913, %v1917, %v1973
  %v1978 = vsel %vm1914, %v1918, %v1974
  %v1979 = vtanh.pop %v1975
  %v1980 = vtanh.pop %v1976
  %v1981 = vtanh.pop %v1977
  %v1982 = vtanh.pop %v1978
  %v1983 = vmul.f32 %v1903, %v1979
  %v1984 = vmul.f32 %v1904, %v1980
  %v1985 = vmul.f32 %v1905, %v1981
  %v1986 = vmul.f32 %v1906, %v1982
  %v1987 = vld [vmem:[%s11] sm:$0xff]
  %v1988 = vld [vmem:[%s11 + $0x8] sm:$0xff]
  %v1989 = vld [vmem:[%s11 + $0x10] sm:$0xff]
  %v1990 = vld [vmem:[%s11 + $0x18] sm:$0xff]
  %v1991 = vld [vmem:[%s1] sm:$0xf]
  %v1992 = vld [vmem:[%s12] sm:$0xff]
  %v1993 = vld [vmem:[%s12 + $0x8] sm:$0xff]
  %v1994 = vld [vmem:[%s12 + $0x10] sm:$0xff]
  %v1995 = vld [vmem:[%s12 + $0x18] sm:$0xff]
  %1997 = vset.pattern.permute.xlu0 0
  %1998 = vperm.xlu0 %1997, %v1992
  %v1999 = vpop.permute.xlu0 %1998
  %2002 = vset.pattern.permute.xlu0 0
  %2003 = vperm.xlu0 %2002, %v1993
  %v2004 = vpop.permute.xlu0 %2003
  %2007 = vset.pattern.permute.xlu0 0
  %2008 = vperm.xlu0 %2007, %v1994
  %v2009 = vpop.permute.xlu0 %2008
  %2012 = vset.pattern.permute.xlu0 0
  %2013 = vperm.xlu0 %2012, %v1995
  %v2014 = vpop.permute.xlu0 %2013
  %vm2016 = vcmask 31744
  %v2018 = vsel %vm2016, %v1987, 0
  %v2021 = vsel %vm2016, %v1988, 0
  %v2024 = vsel %vm2016, %v1989, 0
  %v2027 = vsel %vm2016, %v1990, 0
  %v2030 = vsel %vm107, %v1991, 0
  %2032 = vmatprep.subr.mxu0 0.0
  %2033 = vmatpush1.msra.mxu0 0.0
  %2034 = vmatprep.subr.mxu0 0.0
  %2035 = vmatpush1.msra.mxu0 0.0
  %2036 = vmatprep.subr.mxu0 0.0
  %2037 = vmatpush1.msra.mxu0 0.0
  %2038 = vmatprep.subr.mxu0 0.0
  %2039 = vmatpush1.msra.mxu0 0.0
  %2040 = vmatprep.subr.mxu0 0.0
  %2041 = vmatpush1.msra.mxu0 0.0
  %2042 = vmatprep.subr.mxu0 0.0
  %2043 = vmatpush1.msra.mxu0 0.0
  %2044 = vmatprep.subr.mxu0 0.0
  %2045 = vmatpush1.msra.mxu0 0.0
  %2046 = vmatprep.subr.mxu0 0.0
  %2047 = vmatpush1.msra.mxu0 0.0
  %2048 = vmatprep.subr.mxu0 0.0
  %2049 = vmatpush1.msra.mxu0 0.0
  %2050 = vmatprep.subr.mxu0 0.0
  %2051 = vmatpush1.msra.mxu0 0.0
  %2052 = vmatprep.subr.mxu0 0.0
  %2053 = vmatpush1.msra.mxu0 0.0
  %2054 = vmatprep.subr.mxu0 0.0
  %2055 = vmatpush1.msra.mxu0 0.0
  %2056 = vmatprep.subr.mxu0 0.0
  %2057 = vmatpush1.msra.mxu0 0.0
  %2058 = vmatprep.subr.mxu0 0.0
  %2059 = vmatpush1.msra.mxu0 0.0
  %2060 = vmatprep.subr.mxu0 0.0
  %2061 = vmatpush1.msra.mxu0 0.0
  %2062 = vmatprep.subr.mxu0 0.0
  %2063 = vmatpush1.msra.mxu0 %v2030
  %2064 = vmatprep.subr.mxu0 0.0
  %2065 = vmatpush2.msra.mxu0 0.0
  %2066 = vmatprep.subr.mxu0 0.0
  %2067 = vmatpush2.msra.mxu0 0.0
  %2068 = vmatprep.subr.mxu0 0.0
  %2069 = vmatpush2.msra.mxu0 0.0
  %2070 = vmatprep.subr.mxu0 0.0
  %2071 = vmatpush2.msra.mxu0 0.0
  %2072 = vmatprep.subr.mxu0 0.0
  %2073 = vmatpush2.msra.mxu0 0.0
  %2074 = vmatprep.subr.mxu0 0.0
  %2075 = vmatpush2.msra.mxu0 0.0
  %2076 = vmatprep.subr.mxu0 0.0
  %2077 = vmatpush2.msra.mxu0 0.0
  %2078 = vmatprep.subr.mxu0 0.0
  %2079 = vmatpush2.msra.mxu0 0.0
  %2080 = vmatprep.subr.mxu0 0.0
  %2081 = vmatpush2.msra.mxu0 0.0
  %2082 = vmatprep.subr.mxu0 0.0
  %2083 = vmatpush2.msra.mxu0 0.0
  %2084 = vmatprep.subr.mxu0 0.0
  %2085 = vmatpush2.msra.mxu0 0.0
  %2086 = vmatprep.subr.mxu0 0.0
  %2087 = vmatpush2.msra.mxu0 0.0
  %2088 = vmatprep.subr.mxu0 0.0
  %2089 = vmatpush2.msra.mxu0 0.0
  %2090 = vmatprep.subr.mxu0 0.0
  %2091 = vmatpush2.msra.mxu0 0.0
  %2092 = vmatprep.subr.mxu0 0.0
  %2093 = vmatpush2.msra.mxu0 0.0
  %2094 = vmatprep.subr.mxu0 0.0
  %2095 = vmatpush2.msra.mxu0 0.0
  %2096 = vmatprep.mubr.f32.mxu0 0.0
  %2097 = vmatmul.mubr.f32.gmra.mxu0 %v2018
  %v2098 = vpop.f32.mrf.mxu0
  %v2099 = vadd.f32 %v1999, %v2098
  %v2100 = vpop.f32.mrf.mxu0
  %2101 = vmatprep.mubr.f32.mxu0 0.0
  %2102 = vmatmul.mubr.f32.gmra.mxu0 %v2021
  %v2103 = vpop.f32.mrf.mxu0
  %v2104 = vadd.f32 %v2004, %v2103
  %v2105 = vpop.f32.mrf.mxu0
  %2106 = vmatprep.mubr.f32.mxu0 0.0
  %2107 = vmatmul.mubr.f32.gmra.mxu0 %v2024
  %v2108 = vpop.f32.mrf.mxu0
  %v2109 = vadd.f32 %v2009, %v2108
  %v2110 = vpop.f32.mrf.mxu0
  %2111 = vmatprep.mubr.f32.mxu0 0.0
  %2112 = vmatmul.mubr.f32.gmra.mxu0 %v2027
  %v2113 = vpop.f32.mrf.mxu0
  %v2114 = vadd.f32 %v2014, %v2113
  %v2115 = vpop.f32.mrf.mxu0
  %2116 = vdwg.mxu0
  %v2117 = vadd.f32 %v1983, %v2099
  %v2118 = vadd.f32 %v1984, %v2104
  %v2119 = vadd.f32 %v1985, %v2109
  %v2120 = vadd.f32 %v1986, %v2114
  %2121 = vst.msk [vmem:[%s17] sm:$0xff] %vm204, %v2117
  %2122 = vst.msk [vmem:[%s17 + $0x8] sm:$0xff] %vm204, %v2118
  %2123 = vst.msk [vmem:[%s17 + $0x10] sm:$0xff] %vm204, %v2119
  %2124 = vst.msk [vmem:[%s17 + $0x18] sm:$0xff] %vm204, %v2120
  // Predicated region
  $region70: #{tpu_custom_call.1} parent=0 // pred_check
    _
  $region71: #{tpu_custom_call.1} parent=0 // pred_check_branch
    %2126 = sbr.rel (0) target = $region73
  $region72: #{tpu_custom_call.1} parent=0 // pred_region
    _
  $region73: #{tpu_custom_call.1} parent=0 // pred_fallthru
    _
  // Predicated region
  $region74: #{tpu_custom_call.1} parent=0 // pred_check
    _
  $region75: #{tpu_custom_call.1} parent=0 // pred_check_branch
    %2128 = sbr.rel (0) target = $region77
  $region76: #{tpu_custom_call.1} parent=0 // pred_region
    _
  $region77: #{tpu_custom_call.1} parent=0 // pred_fallthru
    _

</llo_original>
